<compile_context>
chip_gen: v7x
topology: tpu7x:2x2x1
jax: 0.10.0
libtpu: 0.0.40
codegen_flags: <defaults>
</compile_context>

<pallas_src>
import jax
import jax.numpy as jnp
from jax.experimental import pallas as pl
from jax.experimental.pallas import tpu as pltpu


NEG_SLOPE = 0.01          # nn.LeakyReLU default
F_IN = 100                # original input features
F_PAD = 128               # lane-padded input features (col 100 = 1.0 bias column)

# Original layer dims (in, out) and lane-padded output widths.
DIMS = [(100, 1000), (1000, 500), (500, 100), (100, 20), (20, 1)]
PAD_OUT = [1024, 512, 128, 128, 1]


def _round_up(x, m):
    return (x + m - 1) // m * m


def _leaky_relu(x):
    # max(x, 0.01*x): 2 VALU ops/elem, exact for x == 0 (keeps padding zeros zero).
    return jnp.maximum(x, x * NEG_SLOPE)


def _pick_tile(B, requested):
    """Pick the batch tile: minimize padding waste, prefer >=2 grid steps."""
    b8 = _round_up(B, 8)
    cands = [t for t in (128, 256, 512, 1024) if t <= requested] or [128]
    if b8 <= cands[0]:
        return b8                       # small batch: one tile == whole padded batch
    best_pad = min(_round_up(B, t) for t in cands)
    best = [t for t in cands if _round_up(B, t) == best_pad]
    multi = [t for t in best if best_pad // t >= 2]      # keep both v7x TCs busy
    return max(multi) if multi else max(best)


def ann_mlp_kernel(x_ref,
                   w1_ref,
                   w2_ref, b2_ref,
                   w3_ref, b3_ref,
                   w4_ref, b4_ref,
                   w5_ref, b5_ref,
                   o_ref):
    """Fused 5-layer MLP on one batch tile.

    x is bf16 (tile_b, 128) with a 1.0 column at index 100 (folds the layer-1
    bias, stored in row 100 of w1).  MXU matmuls accumulate in f32; the
    bias-add + LeakyReLU epilogue runs in bf16.  Dropout == identity (eval).
    """
    h = x_ref[...]                                              # bf16 (tile_b, 128)

    # Layer 1 (bias folded into w1 via the ones column of x).
    h = jnp.dot(h, w1_ref[...], preferred_element_type=jnp.float32)
    h = _leaky_relu(h.astype(jnp.bfloat16))

    # Layers 2-4: matmul (f32 acc) -> bf16 epilogue (bias + LeakyReLU).
    h = jnp.dot(h, w2_ref[...], preferred_element_type=jnp.float32)
    h = _leaky_relu(h.astype(jnp.bfloat16) + b2_ref[...])

    h = jnp.dot(h, w3_ref[...], preferred_element_type=jnp.float32)
    h = _leaky_relu(h.astype(jnp.bfloat16) + b3_ref[...])

    h = jnp.dot(h, w4_ref[...], preferred_element_type=jnp.float32)
    h = _leaky_relu(h.astype(jnp.bfloat16) + b4_ref[...])

    # Layer 5 (padded 128 -> 1): VPU broadcast-multiply + lane reduction in f32
    # instead of a 1-column MXU matmul.
    w5 = w5_ref[...].astype(jnp.float32)                        # (1, 128)
    h = jnp.sum(h.astype(jnp.float32) * w5, axis=-1, keepdims=True) + b5_ref[...]
    h = _leaky_relu(h)

    o_ref[...] = jax.nn.sigmoid(h).astype(o_ref.dtype)


def prepare_x(x, b_pad):
    """Pad x to (b_pad, 128) bf16 and set the bias column (index 100) to 1.0."""
    B, F = x.shape
    xp = jnp.zeros((b_pad, F_PAD), jnp.bfloat16)
    xp = xp.at[:B, :F].set(x.astype(jnp.bfloat16))
    xp = xp.at[:B, F_IN].set(jnp.ones((B,), jnp.bfloat16))
    return xp


def ann_forward(x, padded_params, *, tile_b=512):
    """x: (B, 100) float32.  padded_params: output of pad_and_cast_params."""
    B, _ = x.shape
    tb = _pick_tile(B, tile_b)
    b_pad = _round_up(B, tb)
    xp = prepare_x(x, b_pad)

    grid = (b_pad // tb,)

    def const_spec(arr):
        # Full-array block, same block every grid step -> stays resident in VMEM.
        return pl.BlockSpec(arr.shape, lambda i: (0, 0))

    in_specs = [pl.BlockSpec((tb, F_PAD), lambda i: (i, 0))]
    in_specs += [const_spec(a) for a in padded_params]
    out_specs = pl.BlockSpec((tb, 1), lambda i: (i, 0))

    # padded_params layout: [w1, w2, b2, w3, b3, w4, b4, w5, b5]
    w_sizes = [padded_params[i].size for i in (0, 1, 3, 5, 7)]
    flops = 2 * b_pad * sum(int(s) for s in w_sizes)
    bytes_accessed = (int(xp.size) * xp.dtype.itemsize
                      + sum(int(a.size) * a.dtype.itemsize for a in padded_params)
                      + b_pad * 4)
    cost = pl.CostEstimate(flops=flops,
                           transcendentals=b_pad,            # sigmoid exp per row
                           bytes_accessed=bytes_accessed)

    out = pl.pallas_call(
        ann_mlp_kernel,
        out_shape=jax.ShapeDtypeStruct((b_pad, 1), jnp.float32),
        grid=grid,
        in_specs=in_specs,
        out_specs=out_specs,
        compiler_params=pltpu.CompilerParams(
            dimension_semantics=("parallel",)),
        cost_estimate=cost,
    )(xp, *padded_params)
    return out[:B]


def init_params(key):
    """Deterministic init mirroring nn.Linear's U(-1/sqrt(fan_in), 1/sqrt(fan_in)).

    Weights stored transposed as (in_features, out_features) so the math is
    x @ W + b, matching PyTorch's x @ W_pt.T + b."""
    params = []
    for fan_in, fan_out in DIMS:
        key, kw, kb = jax.random.split(key, 3)
        bound = 1.0 / jnp.sqrt(float(fan_in))
        w = jax.random.uniform(kw, (fan_in, fan_out), jnp.float32, -bound, bound)
        b = jax.random.uniform(kb, (1, fan_out), jnp.float32, -bound, bound)
        params.append((w, b))
    return params


def pad_and_cast_params(params):
    """Zero-pad to lane multiples and cast to bf16 (b5 stays f32).

    Layout of the returned flat list: [w1, w2, b2, w3, b3, w4, b4, w5, b5].
      * w1 is (128, 1024) bf16 with the layer-1 bias folded into row 100
        (the wrapper puts a 1.0 in x[:, 100]).
      * w2..w4 / b2..b4 are zero-padded bf16.
      * w5 is a (1, 128) bf16 row vector for the VPU reduction path; b5 is
        (1, 1) f32.
    Padding is semantics-preserving: padded weight rows/cols and bias lanes are
    zero and LeakyReLU(0) = 0, so padded activations stay zero through the net.
    """
    (w1, b1), (w2, b2), (w3, b3), (w4, b4), (w5, b5) = params

    w1p = jnp.zeros((F_PAD, PAD_OUT[0]), jnp.float32)
    w1p = w1p.at[:100, :1000].set(w1).at[F_IN, :1000].set(b1[0])
    w1p = w1p.astype(jnp.bfloat16)

    def pad_wb(w, b, in_pad, out_pad):
        fi, fo = w.shape
        wp = jnp.zeros((in_pad, out_pad), jnp.float32).at[:fi, :fo].set(w)
        bp = jnp.zeros((1, out_pad), jnp.float32).at[:, :fo].set(b)
        return wp.astype(jnp.bfloat16), bp.astype(jnp.bfloat16)

    w2p, b2p = pad_wb(w2, b2, 1024, 512)
    w3p, b3p = pad_wb(w3, b3, 512, 128)
    w4p, b4p = pad_wb(w4, b4, 128, 128)

    w5p = jnp.zeros((128, 1), jnp.float32).at[:20, :].set(w5).astype(jnp.bfloat16).T
    b5p = b5.astype(jnp.float32).reshape(1, 1)

    return [w1p, w2p, b2p, w3p, b3p, w4p, b4p, w5p, b5p]


def reference_forward_matched(xp, padded_params):
    """Plain-XLA reference mirroring the kernel's exact arithmetic."""
    w1, w2, b2, w3, b3, w4, b4, w5, b5 = padded_params
    h = jnp.dot(xp, w1, preferred_element_type=jnp.float32)
    h = _leaky_relu(h.astype(jnp.bfloat16))
    for w, b in ((w2, b2), (w3, b3), (w4, b4)):
        h = jnp.dot(h, w, preferred_element_type=jnp.float32)
        h = _leaky_relu(h.astype(jnp.bfloat16) + b)
    h = jnp.sum(h.astype(jnp.float32) * w5.astype(jnp.float32),
                axis=-1, keepdims=True) + b5
    h = _leaky_relu(h)
    return jax.nn.sigmoid(h)


def reference_forward_f32(x, params):
    """Original-precision reference (unpadded f32 weights / activations)."""
    h = x
    for w, b in params:
        h = _leaky_relu(jnp.dot(h, w) + b)
    return jax.nn.sigmoid(h)


if __name__ == "__main__":
    key = jax.random.PRNGKey(0)
    key, kx = jax.random.split(key)

    B = 8
    x = jax.random.normal(kx, (B, F_IN), jnp.float32)
    params = init_params(key)
    padded = pad_and_cast_params(params)

    out = jax.block_until_ready(ann_forward(x, padded))
    assert out.shape == (B, 1), out.shape

    xp_ref = prepare_x(x, B)
    ref_matched = reference_forward_matched(xp_ref, padded)
    ref_f32 = reference_forward_f32(x, params)

    err_matched = float(jnp.max(jnp.abs(out - ref_matched)))
    err_f32 = float(jnp.max(jnp.abs(out - ref_f32)))
    assert err_matched < 2e-3, f"bf16-matched reference mismatch: {err_matched}"
    assert err_f32 < 5e-2, f"f32 reference mismatch: {err_f32}"

    print("KERNEL_OK")
</pallas_src>

<mosaic_0001>
module attributes {stable_mosaic.version = 11 : i64} {
  func.func @ann_mlp_kernel(%arg0: i32, %arg1: memref<8x128xbf16, #tpu.memory_space<vmem>>, %arg2: memref<128x1024xbf16, #tpu.memory_space<vmem>>, %arg3: memref<1024x512xbf16, #tpu.memory_space<vmem>>, %arg4: memref<1x512xbf16, #tpu.memory_space<vmem>>, %arg5: memref<512x128xbf16, #tpu.memory_space<vmem>>, %arg6: memref<1x128xbf16, #tpu.memory_space<vmem>>, %arg7: memref<128x128xbf16, #tpu.memory_space<vmem>>, %arg8: memref<1x128xbf16, #tpu.memory_space<vmem>>, %arg9: memref<1x128xbf16, #tpu.memory_space<vmem>>, %arg10: memref<1x1xf32, #tpu.memory_space<vmem>>, %arg11: memref<8x1xf32, #tpu.memory_space<vmem>>) attributes {dimension_semantics = [#tpu.dimension_semantics<parallel>], iteration_bounds = array<i64: 1>, scalar_prefetch = 0 : i64, scratch_operands = 0 : i64, tpu.core_type = #tpu.core_type<tc>, window_params = [{transform_indices = @transform_0, window_bounds = array<i64: 8, 128>}, {pipeline_mode = #tpu.pipeline_mode<synchronous>, transform_indices = @transform_1, window_bounds = array<i64: 128, 1024>}, {pipeline_mode = #tpu.pipeline_mode<synchronous>, transform_indices = @transform_2, window_bounds = array<i64: 1024, 512>}, {pipeline_mode = #tpu.pipeline_mode<synchronous>, transform_indices = @transform_3, window_bounds = array<i64: 1, 512>}, {pipeline_mode = #tpu.pipeline_mode<synchronous>, transform_indices = @transform_4, window_bounds = array<i64: 512, 128>}, {pipeline_mode = #tpu.pipeline_mode<synchronous>, transform_indices = @transform_5, window_bounds = array<i64: 1, 128>}, {pipeline_mode = #tpu.pipeline_mode<synchronous>, transform_indices = @transform_6, window_bounds = array<i64: 128, 128>}, {pipeline_mode = #tpu.pipeline_mode<synchronous>, transform_indices = @transform_7, window_bounds = array<i64: 1, 128>}, {pipeline_mode = #tpu.pipeline_mode<synchronous>, transform_indices = @transform_8, window_bounds = array<i64: 1, 128>}, {pipeline_mode = #tpu.pipeline_mode<synchronous>, transform_indices = @transform_9, window_bounds = array<i64: 1, 1>}, {transform_indices = @transform_10, window_bounds = array<i64: 8, 1>}]} {
    %c0 = arith.constant 0 : index
    %c0_0 = arith.constant 0 : index
    %0 = vector.load %arg1[%c0, %c0_0] : memref<8x128xbf16, #tpu.memory_space<vmem>>, vector<8x128xbf16>
    %c0_1 = arith.constant 0 : index
    %c0_2 = arith.constant 0 : index
    %1 = vector.load %arg2[%c0_1, %c0_2] : memref<128x1024xbf16, #tpu.memory_space<vmem>>, vector<128x1024xbf16>
    %cst = arith.constant dense<0.000000e+00> : vector<8x1024xf32>
    %2 = tpu.matmul %0, %1, %cst {dimension_numbers = #tpu.dot_dimension_numbers<[1], [0], [0], [1], [0, 0, 1, 1], [], []>} : vector<8x128xbf16>, vector<128x1024xbf16>, vector<8x1024xf32> -> vector<8x1024xf32>
    %3 = arith.truncf %2 : vector<8x1024xf32> to vector<8x1024xbf16>
    %cst_3 = arith.constant 1.000980e-02 : bf16
    %4 = vector.broadcast %cst_3 : bf16 to vector<8x1024xbf16>
    %5 = arith.mulf %3, %4 : vector<8x1024xbf16>
    %6 = arith.maximumf %3, %5 : vector<8x1024xbf16>
    %c0_4 = arith.constant 0 : index
    %c0_5 = arith.constant 0 : index
    %7 = vector.load %arg3[%c0_4, %c0_5] : memref<1024x512xbf16, #tpu.memory_space<vmem>>, vector<1024x512xbf16>
    %cst_6 = arith.constant dense<0.000000e+00> : vector<8x512xf32>
    %8 = tpu.matmul %6, %7, %cst_6 {dimension_numbers = #tpu.dot_dimension_numbers<[1], [0], [0], [1], [0, 0, 1, 1], [], []>} : vector<8x1024xbf16>, vector<1024x512xbf16>, vector<8x512xf32> -> vector<8x512xf32>
    %9 = arith.truncf %8 : vector<8x512xf32> to vector<8x512xbf16>
    %c0_7 = arith.constant 0 : index
    %c0_8 = arith.constant 0 : index
    %10 = vector.load %arg4[%c0_7, %c0_8] : memref<1x512xbf16, #tpu.memory_space<vmem>>, vector<1x512xbf16>
    %11 = vector.broadcast %10 : vector<1x512xbf16> to vector<8x512xbf16>
    %12 = arith.addf %9, %11 : vector<8x512xbf16>
    %cst_9 = arith.constant 1.000980e-02 : bf16
    %13 = vector.broadcast %cst_9 : bf16 to vector<8x512xbf16>
    %14 = arith.mulf %12, %13 : vector<8x512xbf16>
    %15 = arith.maximumf %12, %14 : vector<8x512xbf16>
    %c0_10 = arith.constant 0 : index
    %c0_11 = arith.constant 0 : index
    %16 = vector.load %arg5[%c0_10, %c0_11] : memref<512x128xbf16, #tpu.memory_space<vmem>>, vector<512x128xbf16>
    %cst_12 = arith.constant dense<0.000000e+00> : vector<8x128xf32>
    %17 = tpu.matmul %15, %16, %cst_12 {dimension_numbers = #tpu.dot_dimension_numbers<[1], [0], [0], [1], [0, 0, 1, 1], [], []>} : vector<8x512xbf16>, vector<512x128xbf16>, vector<8x128xf32> -> vector<8x128xf32>
    %18 = arith.truncf %17 : vector<8x128xf32> to vector<8x128xbf16>
    %c0_13 = arith.constant 0 : index
    %c0_14 = arith.constant 0 : index
    %19 = vector.load %arg6[%c0_13, %c0_14] : memref<1x128xbf16, #tpu.memory_space<vmem>>, vector<1x128xbf16>
    %20 = vector.broadcast %19 : vector<1x128xbf16> to vector<8x128xbf16>
    %21 = arith.addf %18, %20 : vector<8x128xbf16>
    %cst_15 = arith.constant 1.000980e-02 : bf16
    %22 = vector.broadcast %cst_15 : bf16 to vector<8x128xbf16>
    %23 = arith.mulf %21, %22 : vector<8x128xbf16>
    %24 = arith.maximumf %21, %23 : vector<8x128xbf16>
    %c0_16 = arith.constant 0 : index
    %c0_17 = arith.constant 0 : index
    %25 = vector.load %arg7[%c0_16, %c0_17] : memref<128x128xbf16, #tpu.memory_space<vmem>>, vector<128x128xbf16>
    %cst_18 = arith.constant dense<0.000000e+00> : vector<8x128xf32>
    %26 = tpu.matmul %24, %25, %cst_18 {dimension_numbers = #tpu.dot_dimension_numbers<[1], [0], [0], [1], [0, 0, 1, 1], [], []>} : vector<8x128xbf16>, vector<128x128xbf16>, vector<8x128xf32> -> vector<8x128xf32>
    %27 = arith.truncf %26 : vector<8x128xf32> to vector<8x128xbf16>
    %c0_19 = arith.constant 0 : index
    %c0_20 = arith.constant 0 : index
    %28 = vector.load %arg8[%c0_19, %c0_20] : memref<1x128xbf16, #tpu.memory_space<vmem>>, vector<1x128xbf16>
    %29 = vector.broadcast %28 : vector<1x128xbf16> to vector<8x128xbf16>
    %30 = arith.addf %27, %29 : vector<8x128xbf16>
    %cst_21 = arith.constant 1.000980e-02 : bf16
    %31 = vector.broadcast %cst_21 : bf16 to vector<8x128xbf16>
    %32 = arith.mulf %30, %31 : vector<8x128xbf16>
    %33 = arith.maximumf %30, %32 : vector<8x128xbf16>
    %c0_22 = arith.constant 0 : index
    %c0_23 = arith.constant 0 : index
    %34 = vector.load %arg9[%c0_22, %c0_23] : memref<1x128xbf16, #tpu.memory_space<vmem>>, vector<1x128xbf16>
    %35 = arith.extf %34 : vector<1x128xbf16> to vector<1x128xf32>
    %36 = arith.extf %33 : vector<8x128xbf16> to vector<8x128xf32>
    %37 = vector.broadcast %35 : vector<1x128xf32> to vector<8x128xf32>
    %38 = arith.mulf %36, %37 : vector<8x128xf32>
    %cst_24 = arith.constant dense<0.000000e+00> : vector<8xf32>
    %39 = vector.multi_reduction <add>, %38, %cst_24 [1] : vector<8x128xf32> to vector<8xf32>
    %40 = vector.shape_cast %39 : vector<8xf32> to vector<8x1xf32>
    %c0_25 = arith.constant 0 : index
    %c0_26 = arith.constant 0 : index
    %41 = vector.load %arg10[%c0_25, %c0_26] : memref<1x1xf32, #tpu.memory_space<vmem>>, vector<1x1xf32>
    %42 = vector.broadcast %41 : vector<1x1xf32> to vector<8x1xf32>
    %43 = arith.addf %40, %42 : vector<8x1xf32>
    %cst_27 = arith.constant 0.00999999977 : f32
    %44 = vector.broadcast %cst_27 : f32 to vector<8x1xf32>
    %45 = arith.mulf %43, %44 : vector<8x1xf32>
    %46 = arith.maximumf %43, %45 : vector<8x1xf32>
    %47 = arith.negf %46 : vector<8x1xf32>
    %48 = math.exp %47 : vector<8x1xf32>
    %cst_28 = arith.constant 1.000000e+00 : f32
    %49 = vector.broadcast %cst_28 : f32 to vector<8x1xf32>
    %50 = arith.addf %49, %48 : vector<8x1xf32>
    %51 = arith.divf %49, %50 : vector<8x1xf32>
    %c0_29 = arith.constant 0 : index
    %c0_30 = arith.constant 0 : index
    %52 = vector.load %arg11[%c0_29, %c0_30] : memref<8x1xf32, #tpu.memory_space<vmem>>, vector<8x1xf32>
    tpu.vector_store %arg11[%c0_29, %c0_30], %51 {strides = array<i32>} : memref<8x1xf32, #tpu.memory_space<vmem>>, vector<8x1xf32>,
    return
  }
  func.func @transform_0(%arg0: i32) -> (i32, i32) {
    %c0_i32 = arith.constant 0 : i32
    %c0_i32_0 = arith.constant 0 : i32
    return %arg0, %c0_i32 : i32, i32
  }
  func.func @transform_1(%arg0: i32) -> (i32, i32) {
    %c0_i32 = arith.constant 0 : i32
    %c0_i32_0 = arith.constant 0 : i32
    %c0_i32_1 = arith.constant 0 : i32
    return %c0_i32, %c0_i32_0 : i32, i32
  }
  func.func @transform_2(%arg0: i32) -> (i32, i32) {
    %c0_i32 = arith.constant 0 : i32
    %c0_i32_0 = arith.constant 0 : i32
    %c0_i32_1 = arith.constant 0 : i32
    return %c0_i32, %c0_i32_0 : i32, i32
  }
  func.func @transform_3(%arg0: i32) -> (i32, i32) {
    %c0_i32 = arith.constant 0 : i32
    %c0_i32_0 = arith.constant 0 : i32
    %c0_i32_1 = arith.constant 0 : i32
    return %c0_i32, %c0_i32_0 : i32, i32
  }
  func.func @transform_4(%arg0: i32) -> (i32, i32) {
    %c0_i32 = arith.constant 0 : i32
    %c0_i32_0 = arith.constant 0 : i32
    %c0_i32_1 = arith.constant 0 : i32
    return %c0_i32, %c0_i32_0 : i32, i32
  }
  func.func @transform_5(%arg0: i32) -> (i32, i32) {
    %c0_i32 = arith.constant 0 : i32
    %c0_i32_0 = arith.constant 0 : i32
    %c0_i32_1 = arith.constant 0 : i32
    return %c0_i32, %c0_i32_0 : i32, i32
  }
  func.func @transform_6(%arg0: i32) -> (i32, i32) {
    %c0_i32 = arith.constant 0 : i32
    %c0_i32_0 = arith.constant 0 : i32
    %c0_i32_1 = arith.constant 0 : i32
    return %c0_i32, %c0_i32_0 : i32, i32
  }
  func.func @transform_7(%arg0: i32) -> (i32, i32) {
    %c0_i32 = arith.constant 0 : i32
    %c0_i32_0 = arith.constant 0 : i32
    %c0_i32_1 = arith.constant 0 : i32
    return %c0_i32, %c0_i32_0 : i32, i32
  }
  func.func @transform_8(%arg0: i32) -> (i32, i32) {
    %c0_i32 = arith.constant 0 : i32
    %c0_i32_0 = arith.constant 0 : i32
    %c0_i32_1 = arith.constant 0 : i32
    return %c0_i32, %c0_i32_0 : i32, i32
  }
  func.func @transform_9(%arg0: i32) -> (i32, i32) {
    %c0_i32 = arith.constant 0 : i32
    %c0_i32_0 = arith.constant 0 : i32
    %c0_i32_1 = arith.constant 0 : i32
    return %c0_i32, %c0_i32_0 : i32, i32
  }
  func.func @transform_10(%arg0: i32) -> (i32, i32) {
    %c0_i32 = arith.constant 0 : i32
    %c0_i32_0 = arith.constant 0 : i32
    return %arg0, %c0_i32 : i32, i32
  }
}

</mosaic_0001>

<llo_original>
// kernel: tpu_custom_call.1
$region0: #{tpu_custom_call.1}
  #allocation0 [shape = 'u32[]', space=smem, size = 0x4, offset = 0x4, fixed_abs, tag = 'smem constant byte address 0x4 - core index']
  #allocation1 [shape = 'u32[144,128]{1,0:T(1,128)}', space=vmem, size = 0x12000, scoped, tag = 'internal scratch']
  #allocation2 [shape = 'f32[1,1]{1,0:T(1,128)S(1)}', space=vmem, size = 0x200, scoped, tag = 'scoped memory for tpu_custom_call.1']
  %s0 = inlined_call_operand.hbm [shape: bf16[8,128], index: 0, kind: input, shape index: {}]
  %s1 = inlined_call_operand.hbm [shape: bf16[128,1024], index: 1, kind: input, shape index: {}]
  %s2 = inlined_call_operand.hbm [shape: bf16[1024,512], index: 2, kind: input, shape index: {}]
  %s3 = inlined_call_operand.vmem [shape: bf16[1,512], index: 3, kind: input, shape index: {}]
  %s4 = inlined_call_operand.hbm [shape: bf16[512,128], index: 4, kind: input, shape index: {}]
  %s5 = inlined_call_operand.vmem [shape: bf16[1,128], index: 5, kind: input, shape index: {}]
  %s6 = inlined_call_operand.hbm [shape: bf16[128,128], index: 6, kind: input, shape index: {}]
  %s7 = inlined_call_operand.vmem [shape: bf16[1,128], index: 7, kind: input, shape index: {}]
  %s8 = inlined_call_operand.vmem [shape: bf16[1,128], index: 8, kind: input, shape index: {}]
  %s9 = inlined_call_operand.<no memory space> [shape: f32[1,1], index: 9, kind: input, shape index: {}]
  %s10 = inlined_call_operand.vmem [shape: f32[8,1], index: 10, kind: output, shape index: {}]
  %s11 = sld [smem:[#allocation0]]
  $region70: #{tpu_custom_call.1} parent=0
    _
  %s13 = ssub.s32 1, %s11
  %s14 = scalar_select 0, %s13, %s11
  %v15 = vstv %s9
  %16 = vst [vmem:[#allocation2] sm:$0x1] %v15
  $region1: #{tpu_custom_call.1} parent=0
    #allocation3 [shape = 'u8[2048]{0}', space=vmem, size = 0x800, scoped, tag = 'input window, operand 0, single buffered']
    #allocation4 [shape = 's32[1]{0}', space=sflag, size = 0x4, scoped, tag = 'scoped memory for tpu_custom_call.1']
    #allocation5 [shape = 'u8[262144]{0}', space=vmem, size = 0x40000, scoped, tag = 'input window, operand 1, single buffered']
    #allocation6 [shape = 's32[1]{0}', space=sflag, size = 0x4, scoped, tag = 'scoped memory for tpu_custom_call.1']
    #allocation7 [shape = 'u8[1048576]{0}', space=vmem, size = 0x100000, scoped, tag = 'input window, operand 2, single buffered']
    #allocation8 [shape = 'u8[131072]{0}', space=vmem, size = 0x20000, scoped, tag = 'input window, operand 4, single buffered']
    #allocation9 [shape = 's32[1]{0}', space=sflag, size = 0x4, scoped, tag = 'scoped memory for tpu_custom_call.1']
    #allocation10 [shape = 'u8[32768]{0}', space=vmem, size = 0x8000, scoped, tag = 'input window, operand 6, single buffered']
    %17 = vsyncpa [#allocation4], 0
    %18 = vsyncpa [#allocation6], 0
    %19 = vsyncpa [#allocation9], 0
    // Predicated region
    $region2: #{tpu_custom_call.1} parent=1 // pred_check
      _
    $region3: #{tpu_custom_call.1} parent=1 // pred_check_branch
      %21 = sbr.rel (0) target = $region5
    $region4: #{tpu_custom_call.1} parent=1 // pred_region
      %s23 = ssub.s32 64, 64
      %24 = vsyncadd [#allocation4], %s23
      %s26 = sshll.u32 [#allocation3], 4
      %s27 = int_to_ptr.vmem [resolvable:$true] %s26
      %29 = dma.hbm_to_vmem [thread:$0]  %s0, 64, %s27, [#allocation4]
    $region5: #{tpu_custom_call.1} parent=1 // pred_fallthru
      _
    // Predicated region
    $region6: #{tpu_custom_call.1} parent=1 // pred_check
      _
    $region7: #{tpu_custom_call.1} parent=1 // pred_check_branch
      %31 = sbr.rel (0) target = $region9
    $region8: #{tpu_custom_call.1} parent=1 // pred_region
      %s33 = ssub.s32 8192, 8192
      %34 = vsyncadd [#allocation6], %s33
      %s35 = sshll.u32 [#allocation5], 4
      %s36 = int_to_ptr.vmem [resolvable:$true] %s35
      %41 = dma.hbm_to_vmem [thread:$0]  %s1, 8192, %s36, [#allocation6], 512, 512, 32
    $region9: #{tpu_custom_call.1} parent=1 // pred_fallthru
      _
    // Predicated region
    $region10: #{tpu_custom_call.1} parent=1 // pred_check
      _
    $region11: #{tpu_custom_call.1} parent=1 // pred_check_branch
      %43 = sbr.rel (0) target = $region13
    $region12: #{tpu_custom_call.1} parent=1 // pred_region
      %s45 = ssub.s32 32768, 32768
      %46 = vsyncadd [#allocation6], %s45
      %s47 = sshll.u32 [#allocation7], 4
      %s48 = int_to_ptr.vmem [resolvable:$true] %s47
      %53 = dma.hbm_to_vmem [thread:$0]  %s2, 32768, %s48, [#allocation6], 256, 256, 16
    $region13: #{tpu_custom_call.1} parent=1 // pred_fallthru
      _
    // Predicated region
    $region14: #{tpu_custom_call.1} parent=1 // pred_check
      _
    $region15: #{tpu_custom_call.1} parent=1 // pred_check_branch
      %55 = sbr.rel (0) target = $region17
    $region16: #{tpu_custom_call.1} parent=1 // pred_region
      _
    $region17: #{tpu_custom_call.1} parent=1 // pred_fallthru
      _
    // Predicated region
    $region18: #{tpu_custom_call.1} parent=1 // pred_check
      _
    $region19: #{tpu_custom_call.1} parent=1 // pred_check_branch
      %57 = sbr.rel (0) target = $region21
    $region20: #{tpu_custom_call.1} parent=1 // pred_region
      %s59 = ssub.s32 4096, 4096
      %60 = vsyncadd [#allocation9], %s59
      %s61 = sshll.u32 [#allocation8], 4
      %s62 = int_to_ptr.vmem [resolvable:$true] %s61
      %67 = dma.hbm_to_vmem [thread:$0]  %s4, 4096, %s62, [#allocation9], 64, 64, 4
    $region21: #{tpu_custom_call.1} parent=1 // pred_fallthru
      _
    // Predicated region
    $region22: #{tpu_custom_call.1} parent=1 // pred_check
      _
    $region23: #{tpu_custom_call.1} parent=1 // pred_check_branch
      %69 = sbr.rel (0) target = $region25
    $region24: #{tpu_custom_call.1} parent=1 // pred_region
      _
    $region25: #{tpu_custom_call.1} parent=1 // pred_fallthru
      _
    // Predicated region
    $region26: #{tpu_custom_call.1} parent=1 // pred_check
      _
    $region27: #{tpu_custom_call.1} parent=1 // pred_check_branch
      %71 = sbr.rel (0) target = $region29
    $region28: #{tpu_custom_call.1} parent=1 // pred_region
      %s73 = ssub.s32 1024, 1024
      %74 = vsyncadd [#allocation9], %s73
      %s75 = sshll.u32 [#allocation10], 4
      %s76 = int_to_ptr.vmem [resolvable:$true] %s75
      %81 = dma.hbm_to_vmem [thread:$0]  %s6, 1024, %s76, [#allocation9], 64, 64, 4
    $region29: #{tpu_custom_call.1} parent=1 // pred_fallthru
      _
    // Predicated region
    $region30: #{tpu_custom_call.1} parent=1 // pred_check
      _
    $region31: #{tpu_custom_call.1} parent=1 // pred_check_branch
      %83 = sbr.rel (0) target = $region33
    $region32: #{tpu_custom_call.1} parent=1 // pred_region
      _
    $region33: #{tpu_custom_call.1} parent=1 // pred_fallthru
      _
    // Predicated region
    $region34: #{tpu_custom_call.1} parent=1 // pred_check
      _
    $region35: #{tpu_custom_call.1} parent=1 // pred_check_branch
      %85 = sbr.rel (0) target = $region37
    $region36: #{tpu_custom_call.1} parent=1 // pred_region
      _
    $region37: #{tpu_custom_call.1} parent=1 // pred_fallthru
      _
    // Predicated region
    $region38: #{tpu_custom_call.1} parent=1 // pred_check
      _
    $region39: #{tpu_custom_call.1} parent=1 // pred_check_branch
      %87 = sbr.rel (0) target = $region41
    $region40: #{tpu_custom_call.1} parent=1 // pred_region
      _
    $region41: #{tpu_custom_call.1} parent=1 // pred_fallthru
      _
    // Predicated region
    $region42: #{tpu_custom_call.1} parent=1 // pred_check
      _
    $region43: #{tpu_custom_call.1} parent=1 // pred_check_branch
      %89 = sbr.rel (0) target = $region45
    $region44: #{tpu_custom_call.1} parent=1 // pred_region
      %90 = dma.done [#allocation4], 64
    $region45: #{tpu_custom_call.1} parent=1 // pred_fallthru
      _
    // Predicated region
    $region46: #{tpu_custom_call.1} parent=1 // pred_check
      _
    $region47: #{tpu_custom_call.1} parent=1 // pred_check_branch
      %92 = sbr.rel (0) target = $region49
    $region48: #{tpu_custom_call.1} parent=1 // pred_region
      %93 = dma.done [#allocation6], 8192
    $region49: #{tpu_custom_call.1} parent=1 // pred_fallthru
      _
    // Predicated region
    $region50: #{tpu_custom_call.1} parent=1 // pred_check
      _
    $region51: #{tpu_custom_call.1} parent=1 // pred_check_branch
      %95 = sbr.rel (0) target = $region53
    $region52: #{tpu_custom_call.1} parent=1 // pred_region
      %96 = dma.done [#allocation6], 32768
    $region53: #{tpu_custom_call.1} parent=1 // pred_fallthru
      _
    // Predicated region
    $region54: #{tpu_custom_call.1} parent=1 // pred_check
      _
    $region55: #{tpu_custom_call.1} parent=1 // pred_check_branch
      %98 = sbr.rel (0) target = $region57
    $region56: #{tpu_custom_call.1} parent=1 // pred_region
      %99 = dma.done [#allocation9], 4096
    $region57: #{tpu_custom_call.1} parent=1 // pred_fallthru
      _
    // Predicated region
    $region58: #{tpu_custom_call.1} parent=1 // pred_check
      _
    $region59: #{tpu_custom_call.1} parent=1 // pred_check_branch
      %101 = sbr.rel (0) target = $region61
    $region60: #{tpu_custom_call.1} parent=1 // pred_region
      %102 = dma.done [#allocation9], 1024
    $region61: #{tpu_custom_call.1} parent=1 // pred_fallthru
      _
    %v105 = vld [vmem:[#allocation3] sm:$0xf]
    %v106 = vld [vmem:[#allocation5] sm:$0xff]
    %v107 = vld [vmem:[#allocation5 + $0x8] sm:$0xff]
    %v108 = vld [vmem:[#allocation5 + $0x10] sm:$0xff]
    %v109 = vld [vmem:[#allocation5 + $0x18] sm:$0xff]
    %v110 = vld [vmem:[#allocation5 + $0x20] sm:$0xff]
    %v111 = vld [vmem:[#allocation5 + $0x28] sm:$0xff]
    %v112 = vld [vmem:[#allocation5 + $0x30] sm:$0xff]
    %v113 = vld [vmem:[#allocation5 + $0x38] sm:$0xff]
    %v114 = vld [vmem:[#allocation5 + $0x40] sm:$0xff]
    %v115 = vld [vmem:[#allocation5 + $0x48] sm:$0xff]
    %v116 = vld [vmem:[#allocation5 + $0x50] sm:$0xff]
    %v117 = vld [vmem:[#allocation5 + $0x58] sm:$0xff]
    %v118 = vld [vmem:[#allocation5 + $0x60] sm:$0xff]
    %v119 = vld [vmem:[#allocation5 + $0x68] sm:$0xff]
    %v120 = vld [vmem:[#allocation5 + $0x70] sm:$0xff]
    %v121 = vld [vmem:[#allocation5 + $0x78] sm:$0xff]
    %v122 = vld [vmem:[#allocation5 + $0x80] sm:$0xff]
    %v123 = vld [vmem:[#allocation5 + $0x88] sm:$0xff]
    %v124 = vld [vmem:[#allocation5 + $0x90] sm:$0xff]
    %v125 = vld [vmem:[#allocation5 + $0x98] sm:$0xff]
    %v126 = vld [vmem:[#allocation5 + $0xa0] sm:$0xff]
    %v127 = vld [vmem:[#allocation5 + $0xa8] sm:$0xff]
    %v128 = vld [vmem:[#allocation5 + $0xb0] sm:$0xff]
    %v129 = vld [vmem:[#allocation5 + $0xb8] sm:$0xff]
    %v130 = vld [vmem:[#allocation5 + $0xc0] sm:$0xff]
    %v131 = vld [vmem:[#allocation5 + $0xc8] sm:$0xff]
    %v132 = vld [vmem:[#allocation5 + $0xd0] sm:$0xff]
    %v133 = vld [vmem:[#allocation5 + $0xd8] sm:$0xff]
    %v134 = vld [vmem:[#allocation5 + $0xe0] sm:$0xff]
    %v135 = vld [vmem:[#allocation5 + $0xe8] sm:$0xff]
    %v136 = vld [vmem:[#allocation5 + $0xf0] sm:$0xff]
    %v137 = vld [vmem:[#allocation5 + $0xf8] sm:$0xff]
    %v138 = vld [vmem:[#allocation5 + $0x100] sm:$0xff]
    %v139 = vld [vmem:[#allocation5 + $0x108] sm:$0xff]
    %v140 = vld [vmem:[#allocation5 + $0x110] sm:$0xff]
    %v141 = vld [vmem:[#allocation5 + $0x118] sm:$0xff]
    %v142 = vld [vmem:[#allocation5 + $0x120] sm:$0xff]
    %v143 = vld [vmem:[#allocation5 + $0x128] sm:$0xff]
    %v144 = vld [vmem:[#allocation5 + $0x130] sm:$0xff]
    %v145 = vld [vmem:[#allocation5 + $0x138] sm:$0xff]
    %v146 = vld [vmem:[#allocation5 + $0x140] sm:$0xff]
    %v147 = vld [vmem:[#allocation5 + $0x148] sm:$0xff]
    %v148 = vld [vmem:[#allocation5 + $0x150] sm:$0xff]
    %v149 = vld [vmem:[#allocation5 + $0x158] sm:$0xff]
    %v150 = vld [vmem:[#allocation5 + $0x160] sm:$0xff]
    %v151 = vld [vmem:[#allocation5 + $0x168] sm:$0xff]
    %v152 = vld [vmem:[#allocation5 + $0x170] sm:$0xff]
    %v153 = vld [vmem:[#allocation5 + $0x178] sm:$0xff]
    %v154 = vld [vmem:[#allocation5 + $0x180] sm:$0xff]
    %v155 = vld [vmem:[#allocation5 + $0x188] sm:$0xff]
    %v156 = vld [vmem:[#allocation5 + $0x190] sm:$0xff]
    %v157 = vld [vmem:[#allocation5 + $0x198] sm:$0xff]
    %v158 = vld [vmem:[#allocation5 + $0x1a0] sm:$0xff]
    %v159 = vld [vmem:[#allocation5 + $0x1a8] sm:$0xff]
    %v160 = vld [vmem:[#allocation5 + $0x1b0] sm:$0xff]
    %v161 = vld [vmem:[#allocation5 + $0x1b8] sm:$0xff]
    %v162 = vld [vmem:[#allocation5 + $0x1c0] sm:$0xff]
    %v163 = vld [vmem:[#allocation5 + $0x1c8] sm:$0xff]
    %v164 = vld [vmem:[#allocation5 + $0x1d0] sm:$0xff]
    %v165 = vld [vmem:[#allocation5 + $0x1d8] sm:$0xff]
    %v166 = vld [vmem:[#allocation5 + $0x1e0] sm:$0xff]
    %v167 = vld [vmem:[#allocation5 + $0x1e8] sm:$0xff]
    %v168 = vld [vmem:[#allocation5 + $0x1f0] sm:$0xff]
    %v169 = vld [vmem:[#allocation5 + $0x1f8] sm:$0xff]
    %v234 = vunpack.c.l.b16 %v106
    %v235 = vunpack.c.h.b16 %v106
    %v236 = vunpack.c.l.b16 %v107
    %v237 = vunpack.c.h.b16 %v107
    %v238 = vunpack.c.l.b16 %v108
    %v239 = vunpack.c.h.b16 %v108
    %v240 = vunpack.c.l.b16 %v109
    %v241 = vunpack.c.h.b16 %v109
    %v242 = vunpack.c.l.b16 %v110
    %v243 = vunpack.c.h.b16 %v110
    %v244 = vunpack.c.l.b16 %v111
    %v245 = vunpack.c.h.b16 %v111
    %v246 = vunpack.c.l.b16 %v112
    %v247 = vunpack.c.h.b16 %v112
    %v248 = vunpack.c.l.b16 %v113
    %v249 = vunpack.c.h.b16 %v113
    %v250 = vunpack.c.l.b16 %v114
    %v251 = vunpack.c.h.b16 %v114
    %v252 = vunpack.c.l.b16 %v115
    %v253 = vunpack.c.h.b16 %v115
    %v254 = vunpack.c.l.b16 %v116
    %v255 = vunpack.c.h.b16 %v116
    %v256 = vunpack.c.l.b16 %v117
    %v257 = vunpack.c.h.b16 %v117
    %v258 = vunpack.c.l.b16 %v118
    %v259 = vunpack.c.h.b16 %v118
    %v260 = vunpack.c.l.b16 %v119
    %v261 = vunpack.c.h.b16 %v119
    %v262 = vunpack.c.l.b16 %v120
    %v263 = vunpack.c.h.b16 %v120
    %v264 = vunpack.c.l.b16 %v121
    %v265 = vunpack.c.h.b16 %v121
    %v266 = vunpack.c.l.b16 %v122
    %v267 = vunpack.c.h.b16 %v122
    %v268 = vunpack.c.l.b16 %v123
    %v269 = vunpack.c.h.b16 %v123
    %v270 = vunpack.c.l.b16 %v124
    %v271 = vunpack.c.h.b16 %v124
    %v272 = vunpack.c.l.b16 %v125
    %v273 = vunpack.c.h.b16 %v125
    %v274 = vunpack.c.l.b16 %v126
    %v275 = vunpack.c.h.b16 %v126
    %v276 = vunpack.c.l.b16 %v127
    %v277 = vunpack.c.h.b16 %v127
    %v278 = vunpack.c.l.b16 %v128
    %v279 = vunpack.c.h.b16 %v128
    %v280 = vunpack.c.l.b16 %v129
    %v281 = vunpack.c.h.b16 %v129
    %v282 = vunpack.c.l.b16 %v130
    %v283 = vunpack.c.h.b16 %v130
    %v284 = vunpack.c.l.b16 %v131
    %v285 = vunpack.c.h.b16 %v131
    %v286 = vunpack.c.l.b16 %v132
    %v287 = vunpack.c.h.b16 %v132
    %v288 = vunpack.c.l.b16 %v133
    %v289 = vunpack.c.h.b16 %v133
    %v290 = vunpack.c.l.b16 %v134
    %v291 = vunpack.c.h.b16 %v134
    %v292 = vunpack.c.l.b16 %v135
    %v293 = vunpack.c.h.b16 %v135
    %v294 = vunpack.c.l.b16 %v136
    %v295 = vunpack.c.h.b16 %v136
    %v296 = vunpack.c.l.b16 %v137
    %v297 = vunpack.c.h.b16 %v137
    %v298 = vunpack.c.l.b16 %v138
    %v299 = vunpack.c.h.b16 %v138
    %v300 = vunpack.c.l.b16 %v139
    %v301 = vunpack.c.h.b16 %v139
    %v302 = vunpack.c.l.b16 %v140
    %v303 = vunpack.c.h.b16 %v140
    %v304 = vunpack.c.l.b16 %v141
    %v305 = vunpack.c.h.b16 %v141
    %v306 = vunpack.c.l.b16 %v142
    %v307 = vunpack.c.h.b16 %v142
    %v308 = vunpack.c.l.b16 %v143
    %v309 = vunpack.c.h.b16 %v143
    %v310 = vunpack.c.l.b16 %v144
    %v311 = vunpack.c.h.b16 %v144
    %v312 = vunpack.c.l.b16 %v145
    %v313 = vunpack.c.h.b16 %v145
    %v314 = vunpack.c.l.b16 %v146
    %v315 = vunpack.c.h.b16 %v146
    %v316 = vunpack.c.l.b16 %v147
    %v317 = vunpack.c.h.b16 %v147
    %v318 = vunpack.c.l.b16 %v148
    %v319 = vunpack.c.h.b16 %v148
    %v320 = vunpack.c.l.b16 %v149
    %v321 = vunpack.c.h.b16 %v149
    %v322 = vunpack.c.l.b16 %v150
    %v323 = vunpack.c.h.b16 %v150
    %v324 = vunpack.c.l.b16 %v151
    %v325 = vunpack.c.h.b16 %v151
    %v326 = vunpack.c.l.b16 %v152
    %v327 = vunpack.c.h.b16 %v152
    %v328 = vunpack.c.l.b16 %v153
    %v329 = vunpack.c.h.b16 %v153
    %v330 = vunpack.c.l.b16 %v154
    %v331 = vunpack.c.h.b16 %v154
    %v332 = vunpack.c.l.b16 %v155
    %v333 = vunpack.c.h.b16 %v155
    %v334 = vunpack.c.l.b16 %v156
    %v335 = vunpack.c.h.b16 %v156
    %v336 = vunpack.c.l.b16 %v157
    %v337 = vunpack.c.h.b16 %v157
    %v338 = vunpack.c.l.b16 %v158
    %v339 = vunpack.c.h.b16 %v158
    %v340 = vunpack.c.l.b16 %v159
    %v341 = vunpack.c.h.b16 %v159
    %v342 = vunpack.c.l.b16 %v160
    %v343 = vunpack.c.h.b16 %v160
    %v344 = vunpack.c.l.b16 %v161
    %v345 = vunpack.c.h.b16 %v161
    %v346 = vunpack.c.l.b16 %v162
    %v347 = vunpack.c.h.b16 %v162
    %v348 = vunpack.c.l.b16 %v163
    %v349 = vunpack.c.h.b16 %v163
    %v350 = vunpack.c.l.b16 %v164
    %v351 = vunpack.c.h.b16 %v164
    %v352 = vunpack.c.l.b16 %v165
    %v353 = vunpack.c.h.b16 %v165
    %v354 = vunpack.c.l.b16 %v166
    %v355 = vunpack.c.h.b16 %v166
    %v356 = vunpack.c.l.b16 %v167
    %v357 = vunpack.c.h.b16 %v167
    %v358 = vunpack.c.l.b16 %v168
    %v359 = vunpack.c.h.b16 %v168
    %v360 = vunpack.c.l.b16 %v169
    %v361 = vunpack.c.h.b16 %v169
    %v362 = vpack.c.b16 %v242, %v234
    %v363 = vpack.c.b16 %v243, %v235
    %v364 = vpack.c.b16 %v244, %v236
    %v365 = vpack.c.b16 %v245, %v237
    %v366 = vpack.c.b16 %v246, %v238
    %v367 = vpack.c.b16 %v247, %v239
    %v368 = vpack.c.b16 %v248, %v240
    %v369 = vpack.c.b16 %v249, %v241
    %v370 = vpack.c.b16 %v258, %v250
    %v371 = vpack.c.b16 %v259, %v251
    %v372 = vpack.c.b16 %v260, %v252
    %v373 = vpack.c.b16 %v261, %v253
    %v374 = vpack.c.b16 %v262, %v254
    %v375 = vpack.c.b16 %v263, %v255
    %v376 = vpack.c.b16 %v264, %v256
    %v377 = vpack.c.b16 %v265, %v257
    %v378 = vpack.c.b16 %v274, %v266
    %v379 = vpack.c.b16 %v275, %v267
    %v380 = vpack.c.b16 %v276, %v268
    %v381 = vpack.c.b16 %v277, %v269
    %v382 = vpack.c.b16 %v278, %v270
    %v383 = vpack.c.b16 %v279, %v271
    %v384 = vpack.c.b16 %v280, %v272
    %v385 = vpack.c.b16 %v281, %v273
    %v386 = vpack.c.b16 %v290, %v282
    %v387 = vpack.c.b16 %v291, %v283
    %v388 = vpack.c.b16 %v292, %v284
    %v389 = vpack.c.b16 %v293, %v285
    %v390 = vpack.c.b16 %v294, %v286
    %v391 = vpack.c.b16 %v295, %v287
    %v392 = vpack.c.b16 %v296, %v288
    %v393 = vpack.c.b16 %v297, %v289
    %v394 = vpack.c.b16 %v306, %v298
    %v395 = vpack.c.b16 %v307, %v299
    %v396 = vpack.c.b16 %v308, %v300
    %v397 = vpack.c.b16 %v309, %v301
    %v398 = vpack.c.b16 %v310, %v302
    %v399 = vpack.c.b16 %v311, %v303
    %v400 = vpack.c.b16 %v312, %v304
    %v401 = vpack.c.b16 %v313, %v305
    %v402 = vpack.c.b16 %v322, %v314
    %v403 = vpack.c.b16 %v323, %v315
    %v404 = vpack.c.b16 %v324, %v316
    %v405 = vpack.c.b16 %v325, %v317
    %v406 = vpack.c.b16 %v326, %v318
    %v407 = vpack.c.b16 %v327, %v319
    %v408 = vpack.c.b16 %v328, %v320
    %v409 = vpack.c.b16 %v329, %v321
    %v410 = vpack.c.b16 %v338, %v330
    %v411 = vpack.c.b16 %v339, %v331
    %v412 = vpack.c.b16 %v340, %v332
    %v413 = vpack.c.b16 %v341, %v333
    %v414 = vpack.c.b16 %v342, %v334
    %v415 = vpack.c.b16 %v343, %v335
    %v416 = vpack.c.b16 %v344, %v336
    %v417 = vpack.c.b16 %v345, %v337
    %v418 = vpack.c.b16 %v354, %v346
    %v419 = vpack.c.b16 %v355, %v347
    %v420 = vpack.c.b16 %v356, %v348
    %v421 = vpack.c.b16 %v357, %v349
    %v422 = vpack.c.b16 %v358, %v350
    %v423 = vpack.c.b16 %v359, %v351
    %v424 = vpack.c.b16 %v360, %v352
    %v425 = vpack.c.b16 %v361, %v353
    %490 = vmatprep.subr.bf16.mxu0 %v363
    %491 = vmatpush1.bf16.msra.mxu0 %v362
    %492 = vmatprep.subr.bf16.mxu0 %v371
    %493 = vmatpush1.bf16.msra.mxu0 %v370
    %494 = vmatprep.subr.bf16.mxu0 %v379
    %495 = vmatpush1.bf16.msra.mxu0 %v378
    %496 = vmatprep.subr.bf16.mxu0 %v387
    %497 = vmatpush1.bf16.msra.mxu0 %v386
    %498 = vmatprep.subr.bf16.mxu0 %v395
    %499 = vmatpush1.bf16.msra.mxu0 %v394
    %500 = vmatprep.subr.bf16.mxu0 %v403
    %501 = vmatpush1.bf16.msra.mxu0 %v402
    %502 = vmatprep.subr.bf16.mxu0 %v411
    %503 = vmatpush1.bf16.msra.mxu0 %v410
    %504 = vmatprep.subr.bf16.mxu0 %v419
    %505 = vmatpush1.bf16.msra.mxu0 %v418
    %506 = vmatprep.subr.bf16.mxu0 0
    %507 = vmatpush1.bf16.msra.mxu0 0
    %508 = vmatprep.subr.bf16.mxu0 0
    %509 = vmatpush1.bf16.msra.mxu0 0
    %510 = vmatprep.subr.bf16.mxu0 0
    %511 = vmatpush1.bf16.msra.mxu0 0
    %512 = vmatprep.subr.bf16.mxu0 0
    %513 = vmatpush1.bf16.msra.mxu0 0
    %514 = vmatprep.subr.bf16.mxu0 0
    %515 = vmatpush1.bf16.msra.mxu0 0
    %516 = vmatprep.subr.bf16.mxu0 0
    %517 = vmatpush1.bf16.msra.mxu0 0
    %518 = vmatprep.subr.bf16.mxu0 0
    %519 = vmatpush1.bf16.msra.mxu0 0
    %520 = vmatprep.subr.bf16.mxu0 0
    %521 = vmatpush1.bf16.msra.mxu0 0
    %522 = vmatprep.mubr.bf16.mxu0 0
    %523 = vmatmul.mubr.bf16.gmra.mrb[0].mxu0 %v105
    %v524 = vpop.f32.mrb[0].mxu0
    %v525 = vadd.f32 0.0, %v524
    %v526 = vpop.f32.mrb[0].mxu0
    %v527 = vadd.f32 0.0, %v526
    %v528 = vpop.f32.mrb[0].mxu0
    %v529 = vpop.f32.mrb[0].mxu0
    %530 = vdwg.mxu0
    %531 = vmatprep.subr.bf16.mxu0 %v365
    %532 = vmatpush1.bf16.msra.mxu0 %v364
    %533 = vmatprep.subr.bf16.mxu0 %v373
    %534 = vmatpush1.bf16.msra.mxu0 %v372
    %535 = vmatprep.subr.bf16.mxu0 %v381
    %536 = vmatpush1.bf16.msra.mxu0 %v380
    %537 = vmatprep.subr.bf16.mxu0 %v389
    %538 = vmatpush1.bf16.msra.mxu0 %v388
    %539 = vmatprep.subr.bf16.mxu0 %v397
    %540 = vmatpush1.bf16.msra.mxu0 %v396
    %541 = vmatprep.subr.bf16.mxu0 %v405
    %542 = vmatpush1.bf16.msra.mxu0 %v404
    %543 = vmatprep.subr.bf16.mxu0 %v413
    %544 = vmatpush1.bf16.msra.mxu0 %v412
    %545 = vmatprep.subr.bf16.mxu0 %v421
    %546 = vmatpush1.bf16.msra.mxu0 %v420
    %547 = vmatprep.subr.bf16.mxu0 0
    %548 = vmatpush1.bf16.msra.mxu0 0
    %549 = vmatprep.subr.bf16.mxu0 0
    %550 = vmatpush1.bf16.msra.mxu0 0
    %551 = vmatprep.subr.bf16.mxu0 0
    %552 = vmatpush1.bf16.msra.mxu0 0
    %553 = vmatprep.subr.bf16.mxu0 0
    %554 = vmatpush1.bf16.msra.mxu0 0
    %555 = vmatprep.subr.bf16.mxu0 0
    %556 = vmatpush1.bf16.msra.mxu0 0
    %557 = vmatprep.subr.bf16.mxu0 0
    %558 = vmatpush1.bf16.msra.mxu0 0
    %559 = vmatprep.subr.bf16.mxu0 0
    %560 = vmatpush1.bf16.msra.mxu0 0
    %561 = vmatprep.subr.bf16.mxu0 0
    %562 = vmatpush1.bf16.msra.mxu0 0
    %563 = vmatprep.mubr.bf16.mxu0 0
    %564 = vmatmul.mubr.bf16.gmra.mrb[0].mxu0 %v105
    %v565 = vpop.f32.mrb[0].mxu0
    %v566 = vadd.f32 0.0, %v565
    %v567 = vpop.f32.mrb[0].mxu0
    %v568 = vadd.f32 0.0, %v567
    %v569 = vpop.f32.mrb[0].mxu0
    %v570 = vpop.f32.mrb[0].mxu0
    %571 = vdwg.mxu0
    %572 = vmatprep.subr.bf16.mxu0 %v367
    %573 = vmatpush1.bf16.msra.mxu0 %v366
    %574 = vmatprep.subr.bf16.mxu0 %v375
    %575 = vmatpush1.bf16.msra.mxu0 %v374
    %576 = vmatprep.subr.bf16.mxu0 %v383
    %577 = vmatpush1.bf16.msra.mxu0 %v382
    %578 = vmatprep.subr.bf16.mxu0 %v391
    %579 = vmatpush1.bf16.msra.mxu0 %v390
    %580 = vmatprep.subr.bf16.mxu0 %v399
    %581 = vmatpush1.bf16.msra.mxu0 %v398
    %582 = vmatprep.subr.bf16.mxu0 %v407
    %583 = vmatpush1.bf16.msra.mxu0 %v406
    %584 = vmatprep.subr.bf16.mxu0 %v415
    %585 = vmatpush1.bf16.msra.mxu0 %v414
    %586 = vmatprep.subr.bf16.mxu0 %v423
    %587 = vmatpush1.bf16.msra.mxu0 %v422
    %588 = vmatprep.subr.bf16.mxu0 0
    %589 = vmatpush1.bf16.msra.mxu0 0
    %590 = vmatprep.subr.bf16.mxu0 0
    %591 = vmatpush1.bf16.msra.mxu0 0
    %592 = vmatprep.subr.bf16.mxu0 0
    %593 = vmatpush1.bf16.msra.mxu0 0
    %594 = vmatprep.subr.bf16.mxu0 0
    %595 = vmatpush1.bf16.msra.mxu0 0
    %596 = vmatprep.subr.bf16.mxu0 0
    %597 = vmatpush1.bf16.msra.mxu0 0
    %598 = vmatprep.subr.bf16.mxu0 0
    %599 = vmatpush1.bf16.msra.mxu0 0
    %600 = vmatprep.subr.bf16.mxu0 0
    %601 = vmatpush1.bf16.msra.mxu0 0
    %602 = vmatprep.subr.bf16.mxu0 0
    %603 = vmatpush1.bf16.msra.mxu0 0
    %604 = vmatprep.mubr.bf16.mxu0 0
    %605 = vmatmul.mubr.bf16.gmra.mrb[0].mxu0 %v105
    %v606 = vpop.f32.mrb[0].mxu0
    %v607 = vadd.f32 0.0, %v606
    %v608 = vpop.f32.mrb[0].mxu0
    %v609 = vadd.f32 0.0, %v608
    %v610 = vpop.f32.mrb[0].mxu0
    %v611 = vpop.f32.mrb[0].mxu0
    %612 = vdwg.mxu0
    %613 = vmatprep.subr.bf16.mxu0 %v369
    %614 = vmatpush1.bf16.msra.mxu0 %v368
    %615 = vmatprep.subr.bf16.mxu0 %v377
    %616 = vmatpush1.bf16.msra.mxu0 %v376
    %617 = vmatprep.subr.bf16.mxu0 %v385
    %618 = vmatpush1.bf16.msra.mxu0 %v384
    %619 = vmatprep.subr.bf16.mxu0 %v393
    %620 = vmatpush1.bf16.msra.mxu0 %v392
    %621 = vmatprep.subr.bf16.mxu0 %v401
    %622 = vmatpush1.bf16.msra.mxu0 %v400
    %623 = vmatprep.subr.bf16.mxu0 %v409
    %624 = vmatpush1.bf16.msra.mxu0 %v408
    %625 = vmatprep.subr.bf16.mxu0 %v417
    %626 = vmatpush1.bf16.msra.mxu0 %v416
    %627 = vmatprep.subr.bf16.mxu0 %v425
    %628 = vmatpush1.bf16.msra.mxu0 %v424
    %629 = vmatprep.subr.bf16.mxu0 0
    %630 = vmatpush1.bf16.msra.mxu0 0
    %631 = vmatprep.subr.bf16.mxu0 0
    %632 = vmatpush1.bf16.msra.mxu0 0
    %633 = vmatprep.subr.bf16.mxu0 0
    %634 = vmatpush1.bf16.msra.mxu0 0
    %635 = vmatprep.subr.bf16.mxu0 0
    %636 = vmatpush1.bf16.msra.mxu0 0
    %637 = vmatprep.subr.bf16.mxu0 0
    %638 = vmatpush1.bf16.msra.mxu0 0
    %639 = vmatprep.subr.bf16.mxu0 0
    %640 = vmatpush1.bf16.msra.mxu0 0
    %641 = vmatprep.subr.bf16.mxu0 0
    %642 = vmatpush1.bf16.msra.mxu0 0
    %643 = vmatprep.subr.bf16.mxu0 0
    %644 = vmatpush1.bf16.msra.mxu0 0
    %645 = vmatprep.mubr.bf16.mxu0 0
    %646 = vmatmul.mubr.bf16.gmra.mrb[0].mxu0 %v105
    %v647 = vpop.f32.mrb[0].mxu0
    %v648 = vadd.f32 0.0, %v647
    %v649 = vpop.f32.mrb[0].mxu0
    %v650 = vadd.f32 0.0, %v649
    %v651 = vpop.f32.mrb[0].mxu0
    %v652 = vpop.f32.mrb[0].mxu0
    %653 = vdwg.mxu0
    %v654 = vpack.c.bf16 %v525, %v525
    %v655 = vpack.c.bf16 %v527, %v527
    %v656 = vpack.c.bf16 %v566, %v566
    %v657 = vpack.c.bf16 %v568, %v568
    %v658 = vpack.c.bf16 %v607, %v607
    %v659 = vpack.c.bf16 %v609, %v609
    %v660 = vpack.c.bf16 %v648, %v648
    %v661 = vpack.c.bf16 %v650, %v650
    %v662 = vmul.bf16 %v654, 1009007652
    %v663 = vmul.bf16 %v655, 1009007652
    %v664 = vmul.bf16 %v656, 1009007652
    %v665 = vmul.bf16 %v657, 1009007652
    %v666 = vmul.bf16 %v658, 1009007652
    %v667 = vmul.bf16 %v659, 1009007652
    %v668 = vmul.bf16 %v660, 1009007652
    %v669 = vmul.bf16 %v661, 1009007652
    %v670 = vmax.bf16 %v654, %v662
    %v671 = vmax.bf16 %v655, %v663
    %v672 = vmax.bf16 %v656, %v664
    %v673 = vmax.bf16 %v657, %v665
    %v674 = vmax.bf16 %v658, %v666
    %v675 = vmax.bf16 %v659, %v667
    %v676 = vmax.bf16 %v660, %v668
    %v677 = vmax.bf16 %v661, %v669
    %v678 = vld [vmem:[#allocation7] sm:$0xff]
    %v679 = vld [vmem:[#allocation7 + $0x8] sm:$0xff]
    %v680 = vld [vmem:[#allocation7 + $0x10] sm:$0xff]
    %v681 = vld [vmem:[#allocation7 + $0x18] sm:$0xff]
    %v682 = vld [vmem:[#allocation7 + $0x20] sm:$0xff]
    %v683 = vld [vmem:[#allocation7 + $0x28] sm:$0xff]
    %v684 = vld [vmem:[#allocation7 + $0x30] sm:$0xff]
    %v685 = vld [vmem:[#allocation7 + $0x38] sm:$0xff]
    %v686 = vld [vmem:[#allocation7 + $0x40] sm:$0xff]
    %v687 = vld [vmem:[#allocation7 + $0x48] sm:$0xff]
    %v688 = vld [vmem:[#allocation7 + $0x50] sm:$0xff]
    %v689 = vld [vmem:[#allocation7 + $0x58] sm:$0xff]
    %v690 = vld [vmem:[#allocation7 + $0x60] sm:$0xff]
    %v691 = vld [vmem:[#allocation7 + $0x68] sm:$0xff]
    %v692 = vld [vmem:[#allocation7 + $0x70] sm:$0xff]
    %v693 = vld [vmem:[#allocation7 + $0x78] sm:$0xff]
    %v694 = vld [vmem:[#allocation7 + $0x80] sm:$0xff]
    %v695 = vld [vmem:[#allocation7 + $0x88] sm:$0xff]
    %v696 = vld [vmem:[#allocation7 + $0x90] sm:$0xff]
    %v697 = vld [vmem:[#allocation7 + $0x98] sm:$0xff]
    %v698 = vld [vmem:[#allocation7 + $0xa0] sm:$0xff]
    %v699 = vld [vmem:[#allocation7 + $0xa8] sm:$0xff]
    %v700 = vld [vmem:[#allocation7 + $0xb0] sm:$0xff]
    %v701 = vld [vmem:[#allocation7 + $0xb8] sm:$0xff]
    %v702 = vld [vmem:[#allocation7 + $0xc0] sm:$0xff]
    %v703 = vld [vmem:[#allocation7 + $0xc8] sm:$0xff]
    %v704 = vld [vmem:[#allocation7 + $0xd0] sm:$0xff]
    %v705 = vld [vmem:[#allocation7 + $0xd8] sm:$0xff]
    %v706 = vld [vmem:[#allocation7 + $0xe0] sm:$0xff]
    %v707 = vld [vmem:[#allocation7 + $0xe8] sm:$0xff]
    %v708 = vld [vmem:[#allocation7 + $0xf0] sm:$0xff]
    %v709 = vld [vmem:[#allocation7 + $0xf8] sm:$0xff]
    %v710 = vld [vmem:[#allocation7 + $0x100] sm:$0xff]
    %v711 = vld [vmem:[#allocation7 + $0x108] sm:$0xff]
    %v712 = vld [vmem:[#allocation7 + $0x110] sm:$0xff]
    %v713 = vld [vmem:[#allocation7 + $0x118] sm:$0xff]
    %v714 = vld [vmem:[#allocation7 + $0x120] sm:$0xff]
    %v715 = vld [vmem:[#allocation7 + $0x128] sm:$0xff]
    %v716 = vld [vmem:[#allocation7 + $0x130] sm:$0xff]
    %v717 = vld [vmem:[#allocation7 + $0x138] sm:$0xff]
    %v718 = vld [vmem:[#allocation7 + $0x140] sm:$0xff]
    %v719 = vld [vmem:[#allocation7 + $0x148] sm:$0xff]
    %v720 = vld [vmem:[#allocation7 + $0x150] sm:$0xff]
    %v721 = vld [vmem:[#allocation7 + $0x158] sm:$0xff]
    %v722 = vld [vmem:[#allocation7 + $0x160] sm:$0xff]
    %v723 = vld [vmem:[#allocation7 + $0x168] sm:$0xff]
    %v724 = vld [vmem:[#allocation7 + $0x170] sm:$0xff]
    %v725 = vld [vmem:[#allocation7 + $0x178] sm:$0xff]
    %v726 = vld [vmem:[#allocation7 + $0x180] sm:$0xff]
    %v727 = vld [vmem:[#allocation7 + $0x188] sm:$0xff]
    %v728 = vld [vmem:[#allocation7 + $0x190] sm:$0xff]
    %v729 = vld [vmem:[#allocation7 + $0x198] sm:$0xff]
    %v730 = vld [vmem:[#allocation7 + $0x1a0] sm:$0xff]
    %v731 = vld [vmem:[#allocation7 + $0x1a8] sm:$0xff]
    %v732 = vld [vmem:[#allocation7 + $0x1b0] sm:$0xff]
    %v733 = vld [vmem:[#allocation7 + $0x1b8] sm:$0xff]
    %v734 = vld [vmem:[#allocation7 + $0x1c0] sm:$0xff]
    %v735 = vld [vmem:[#allocation7 + $0x1c8] sm:$0xff]
    %v736 = vld [vmem:[#allocation7 + $0x1d0] sm:$0xff]
    %v737 = vld [vmem:[#allocation7 + $0x1d8] sm:$0xff]
    %v738 = vld [vmem:[#allocation7 + $0x1e0] sm:$0xff]
    %v739 = vld [vmem:[#allocation7 + $0x1e8] sm:$0xff]
    %v740 = vld [vmem:[#allocation7 + $0x1f0] sm:$0xff]
    %v741 = vld [vmem:[#allocation7 + $0x1f8] sm:$0xff]
    %v742 = vld [vmem:[#allocation7 + $0x200] sm:$0xff]
    %v743 = vld [vmem:[#allocation7 + $0x208] sm:$0xff]
    %v744 = vld [vmem:[#allocation7 + $0x210] sm:$0xff]
    %v745 = vld [vmem:[#allocation7 + $0x218] sm:$0xff]
    %v746 = vld [vmem:[#allocation7 + $0x220] sm:$0xff]
    %v747 = vld [vmem:[#allocation7 + $0x228] sm:$0xff]
    %v748 = vld [vmem:[#allocation7 + $0x230] sm:$0xff]
    %v749 = vld [vmem:[#allocation7 + $0x238] sm:$0xff]
    %v750 = vld [vmem:[#allocation7 + $0x240] sm:$0xff]
    %v751 = vld [vmem:[#allocation7 + $0x248] sm:$0xff]
    %v752 = vld [vmem:[#allocation7 + $0x250] sm:$0xff]
    %v753 = vld [vmem:[#allocation7 + $0x258] sm:$0xff]
    %v754 = vld [vmem:[#allocation7 + $0x260] sm:$0xff]
    %v755 = vld [vmem:[#allocation7 + $0x268] sm:$0xff]
    %v756 = vld [vmem:[#allocation7 + $0x270] sm:$0xff]
    %v757 = vld [vmem:[#allocation7 + $0x278] sm:$0xff]
    %v758 = vld [vmem:[#allocation7 + $0x280] sm:$0xff]
    %v759 = vld [vmem:[#allocation7 + $0x288] sm:$0xff]
    %v760 = vld [vmem:[#allocation7 + $0x290] sm:$0xff]
    %v761 = vld [vmem:[#allocation7 + $0x298] sm:$0xff]
    %v762 = vld [vmem:[#allocation7 + $0x2a0] sm:$0xff]
    %v763 = vld [vmem:[#allocation7 + $0x2a8] sm:$0xff]
    %v764 = vld [vmem:[#allocation7 + $0x2b0] sm:$0xff]
    %v765 = vld [vmem:[#allocation7 + $0x2b8] sm:$0xff]
    %v766 = vld [vmem:[#allocation7 + $0x2c0] sm:$0xff]
    %v767 = vld [vmem:[#allocation7 + $0x2c8] sm:$0xff]
    %v768 = vld [vmem:[#allocation7 + $0x2d0] sm:$0xff]
    %v769 = vld [vmem:[#allocation7 + $0x2d8] sm:$0xff]
    %v770 = vld [vmem:[#allocation7 + $0x2e0] sm:$0xff]
    %v771 = vld [vmem:[#allocation7 + $0x2e8] sm:$0xff]
    %v772 = vld [vmem:[#allocation7 + $0x2f0] sm:$0xff]
    %v773 = vld [vmem:[#allocation7 + $0x2f8] sm:$0xff]
    %v774 = vld [vmem:[#allocation7 + $0x300] sm:$0xff]
    %v775 = vld [vmem:[#allocation7 + $0x308] sm:$0xff]
    %v776 = vld [vmem:[#allocation7 + $0x310] sm:$0xff]
    %v777 = vld [vmem:[#allocation7 + $0x318] sm:$0xff]
    %v778 = vld [vmem:[#allocation7 + $0x320] sm:$0xff]
    %v779 = vld [vmem:[#allocation7 + $0x328] sm:$0xff]
    %v780 = vld [vmem:[#allocation7 + $0x330] sm:$0xff]
    %v781 = vld [vmem:[#allocation7 + $0x338] sm:$0xff]
    %v782 = vld [vmem:[#allocation7 + $0x340] sm:$0xff]
    %v783 = vld [vmem:[#allocation7 + $0x348] sm:$0xff]
    %v784 = vld [vmem:[#allocation7 + $0x350] sm:$0xff]
    %v785 = vld [vmem:[#allocation7 + $0x358] sm:$0xff]
    %v786 = vld [vmem:[#allocation7 + $0x360] sm:$0xff]
    %v787 = vld [vmem:[#allocation7 + $0x368] sm:$0xff]
    %v788 = vld [vmem:[#allocation7 + $0x370] sm:$0xff]
    %v789 = vld [vmem:[#allocation7 + $0x378] sm:$0xff]
    %v790 = vld [vmem:[#allocation7 + $0x380] sm:$0xff]
    %v791 = vld [vmem:[#allocation7 + $0x388] sm:$0xff]
    %v792 = vld [vmem:[#allocation7 + $0x390] sm:$0xff]
    %v793 = vld [vmem:[#allocation7 + $0x398] sm:$0xff]
    %v794 = vld [vmem:[#allocation7 + $0x3a0] sm:$0xff]
    %v795 = vld [vmem:[#allocation7 + $0x3a8] sm:$0xff]
    %v796 = vld [vmem:[#allocation7 + $0x3b0] sm:$0xff]
    %v797 = vld [vmem:[#allocation7 + $0x3b8] sm:$0xff]
    %v798 = vld [vmem:[#allocation7 + $0x3c0] sm:$0xff]
    %v799 = vld [vmem:[#allocation7 + $0x3c8] sm:$0xff]
    %v800 = vld [vmem:[#allocation7 + $0x3d0] sm:$0xff]
    %v801 = vld [vmem:[#allocation7 + $0x3d8] sm:$0xff]
    %v802 = vld [vmem:[#allocation7 + $0x3e0] sm:$0xff]
    %v803 = vld [vmem:[#allocation7 + $0x3e8] sm:$0xff]
    %v804 = vld [vmem:[#allocation7 + $0x3f0] sm:$0xff]
    %v805 = vld [vmem:[#allocation7 + $0x3f8] sm:$0xff]
    %v806 = vld [vmem:[#allocation7 + $0x400] sm:$0xff]
    %v807 = vld [vmem:[#allocation7 + $0x408] sm:$0xff]
    %v808 = vld [vmem:[#allocation7 + $0x410] sm:$0xff]
    %v809 = vld [vmem:[#allocation7 + $0x418] sm:$0xff]
    %v810 = vld [vmem:[#allocation7 + $0x420] sm:$0xff]
    %v811 = vld [vmem:[#allocation7 + $0x428] sm:$0xff]
    %v812 = vld [vmem:[#allocation7 + $0x430] sm:$0xff]
    %v813 = vld [vmem:[#allocation7 + $0x438] sm:$0xff]
    %v814 = vld [vmem:[#allocation7 + $0x440] sm:$0xff]
    %v815 = vld [vmem:[#allocation7 + $0x448] sm:$0xff]
    %v816 = vld [vmem:[#allocation7 + $0x450] sm:$0xff]
    %v817 = vld [vmem:[#allocation7 + $0x458] sm:$0xff]
    %v818 = vld [vmem:[#allocation7 + $0x460] sm:$0xff]
    %v819 = vld [vmem:[#allocation7 + $0x468] sm:$0xff]
    %v820 = vld [vmem:[#allocation7 + $0x470] sm:$0xff]
    %v821 = vld [vmem:[#allocation7 + $0x478] sm:$0xff]
    %v822 = vld [vmem:[#allocation7 + $0x480] sm:$0xff]
    %v823 = vld [vmem:[#allocation7 + $0x488] sm:$0xff]
    %v824 = vld [vmem:[#allocation7 + $0x490] sm:$0xff]
    %v825 = vld [vmem:[#allocation7 + $0x498] sm:$0xff]
    %v826 = vld [vmem:[#allocation7 + $0x4a0] sm:$0xff]
    %v827 = vld [vmem:[#allocation7 + $0x4a8] sm:$0xff]
    %v828 = vld [vmem:[#allocation7 + $0x4b0] sm:$0xff]
    %v829 = vld [vmem:[#allocation7 + $0x4b8] sm:$0xff]
    %v830 = vld [vmem:[#allocation7 + $0x4c0] sm:$0xff]
    %v831 = vld [vmem:[#allocation7 + $0x4c8] sm:$0xff]
    %v832 = vld [vmem:[#allocation7 + $0x4d0] sm:$0xff]
    %v833 = vld [vmem:[#allocation7 + $0x4d8] sm:$0xff]
    %v834 = vld [vmem:[#allocation7 + $0x4e0] sm:$0xff]
    %v835 = vld [vmem:[#allocation7 + $0x4e8] sm:$0xff]
    %v836 = vld [vmem:[#allocation7 + $0x4f0] sm:$0xff]
    %v837 = vld [vmem:[#allocation7 + $0x4f8] sm:$0xff]
    %v838 = vld [vmem:[#allocation7 + $0x500] sm:$0xff]
    %v839 = vld [vmem:[#allocation7 + $0x508] sm:$0xff]
    %v840 = vld [vmem:[#allocation7 + $0x510] sm:$0xff]
    %v841 = vld [vmem:[#allocation7 + $0x518] sm:$0xff]
    %v842 = vld [vmem:[#allocation7 + $0x520] sm:$0xff]
    %v843 = vld [vmem:[#allocation7 + $0x528] sm:$0xff]
    %v844 = vld [vmem:[#allocation7 + $0x530] sm:$0xff]
    %v845 = vld [vmem:[#allocation7 + $0x538] sm:$0xff]
    %v846 = vld [vmem:[#allocation7 + $0x540] sm:$0xff]
    %v847 = vld [vmem:[#allocation7 + $0x548] sm:$0xff]
    %v848 = vld [vmem:[#allocation7 + $0x550] sm:$0xff]
    %v849 = vld [vmem:[#allocation7 + $0x558] sm:$0xff]
    %v850 = vld [vmem:[#allocation7 + $0x560] sm:$0xff]
    %v851 = vld [vmem:[#allocation7 + $0x568] sm:$0xff]
    %v852 = vld [vmem:[#allocation7 + $0x570] sm:$0xff]
    %v853 = vld [vmem:[#allocation7 + $0x578] sm:$0xff]
    %v854 = vld [vmem:[#allocation7 + $0x580] sm:$0xff]
    %v855 = vld [vmem:[#allocation7 + $0x588] sm:$0xff]
    %v856 = vld [vmem:[#allocation7 + $0x590] sm:$0xff]
    %v857 = vld [vmem:[#allocation7 + $0x598] sm:$0xff]
    %v858 = vld [vmem:[#allocation7 + $0x5a0] sm:$0xff]
    %v859 = vld [vmem:[#allocation7 + $0x5a8] sm:$0xff]
    %v860 = vld [vmem:[#allocation7 + $0x5b0] sm:$0xff]
    %v861 = vld [vmem:[#allocation7 + $0x5b8] sm:$0xff]
    %v862 = vld [vmem:[#allocation7 + $0x5c0] sm:$0xff]
    %v863 = vld [vmem:[#allocation7 + $0x5c8] sm:$0xff]
    %v864 = vld [vmem:[#allocation7 + $0x5d0] sm:$0xff]
    %v865 = vld [vmem:[#allocation7 + $0x5d8] sm:$0xff]
    %v866 = vld [vmem:[#allocation7 + $0x5e0] sm:$0xff]
    %v867 = vld [vmem:[#allocation7 + $0x5e8] sm:$0xff]
    %v868 = vld [vmem:[#allocation7 + $0x5f0] sm:$0xff]
    %v869 = vld [vmem:[#allocation7 + $0x5f8] sm:$0xff]
    %v870 = vld [vmem:[#allocation7 + $0x600] sm:$0xff]
    %v871 = vld [vmem:[#allocation7 + $0x608] sm:$0xff]
    %v872 = vld [vmem:[#allocation7 + $0x610] sm:$0xff]
    %v873 = vld [vmem:[#allocation7 + $0x618] sm:$0xff]
    %v874 = vld [vmem:[#allocation7 + $0x620] sm:$0xff]
    %v875 = vld [vmem:[#allocation7 + $0x628] sm:$0xff]
    %v876 = vld [vmem:[#allocation7 + $0x630] sm:$0xff]
    %v877 = vld [vmem:[#allocation7 + $0x638] sm:$0xff]
    %v878 = vld [vmem:[#allocation7 + $0x640] sm:$0xff]
    %v879 = vld [vmem:[#allocation7 + $0x648] sm:$0xff]
    %v880 = vld [vmem:[#allocation7 + $0x650] sm:$0xff]
    %v881 = vld [vmem:[#allocation7 + $0x658] sm:$0xff]
    %v882 = vld [vmem:[#allocation7 + $0x660] sm:$0xff]
    %v883 = vld [vmem:[#allocation7 + $0x668] sm:$0xff]
    %v884 = vld [vmem:[#allocation7 + $0x670] sm:$0xff]
    %v885 = vld [vmem:[#allocation7 + $0x678] sm:$0xff]
    %v886 = vld [vmem:[#allocation7 + $0x680] sm:$0xff]
    %v887 = vld [vmem:[#allocation7 + $0x688] sm:$0xff]
    %v888 = vld [vmem:[#allocation7 + $0x690] sm:$0xff]
    %v889 = vld [vmem:[#allocation7 + $0x698] sm:$0xff]
    %v890 = vld [vmem:[#allocation7 + $0x6a0] sm:$0xff]
    %v891 = vld [vmem:[#allocation7 + $0x6a8] sm:$0xff]
    %v892 = vld [vmem:[#allocation7 + $0x6b0] sm:$0xff]
    %v893 = vld [vmem:[#allocation7 + $0x6b8] sm:$0xff]
    %v894 = vld [vmem:[#allocation7 + $0x6c0] sm:$0xff]
    %v895 = vld [vmem:[#allocation7 + $0x6c8] sm:$0xff]
    %v896 = vld [vmem:[#allocation7 + $0x6d0] sm:$0xff]
    %v897 = vld [vmem:[#allocation7 + $0x6d8] sm:$0xff]
    %v898 = vld [vmem:[#allocation7 + $0x6e0] sm:$0xff]
    %v899 = vld [vmem:[#allocation7 + $0x6e8] sm:$0xff]
    %v900 = vld [vmem:[#allocation7 + $0x6f0] sm:$0xff]
    %v901 = vld [vmem:[#allocation7 + $0x6f8] sm:$0xff]
    %v902 = vld [vmem:[#allocation7 + $0x700] sm:$0xff]
    %v903 = vld [vmem:[#allocation7 + $0x708] sm:$0xff]
    %v904 = vld [vmem:[#allocation7 + $0x710] sm:$0xff]
    %v905 = vld [vmem:[#allocation7 + $0x718] sm:$0xff]
    %v906 = vld [vmem:[#allocation7 + $0x720] sm:$0xff]
    %v907 = vld [vmem:[#allocation7 + $0x728] sm:$0xff]
    %v908 = vld [vmem:[#allocation7 + $0x730] sm:$0xff]
    %v909 = vld [vmem:[#allocation7 + $0x738] sm:$0xff]
    %v910 = vld [vmem:[#allocation7 + $0x740] sm:$0xff]
    %v911 = vld [vmem:[#allocation7 + $0x748] sm:$0xff]
    %v912 = vld [vmem:[#allocation7 + $0x750] sm:$0xff]
    %v913 = vld [vmem:[#allocation7 + $0x758] sm:$0xff]
    %v914 = vld [vmem:[#allocation7 + $0x760] sm:$0xff]
    %v915 = vld [vmem:[#allocation7 + $0x768] sm:$0xff]
    %v916 = vld [vmem:[#allocation7 + $0x770] sm:$0xff]
    %v917 = vld [vmem:[#allocation7 + $0x778] sm:$0xff]
    %v918 = vld [vmem:[#allocation7 + $0x780] sm:$0xff]
    %v919 = vld [vmem:[#allocation7 + $0x788] sm:$0xff]
    %v920 = vld [vmem:[#allocation7 + $0x790] sm:$0xff]
    %v921 = vld [vmem:[#allocation7 + $0x798] sm:$0xff]
    %v922 = vld [vmem:[#allocation7 + $0x7a0] sm:$0xff]
    %v923 = vld [vmem:[#allocation7 + $0x7a8] sm:$0xff]
    %v924 = vld [vmem:[#allocation7 + $0x7b0] sm:$0xff]
    %v925 = vld [vmem:[#allocation7 + $0x7b8] sm:$0xff]
    %v926 = vld [vmem:[#allocation7 + $0x7c0] sm:$0xff]
    %v927 = vld [vmem:[#allocation7 + $0x7c8] sm:$0xff]
    %v928 = vld [vmem:[#allocation7 + $0x7d0] sm:$0xff]
    %v929 = vld [vmem:[#allocation7 + $0x7d8] sm:$0xff]
    %v930 = vld [vmem:[#allocation7 + $0x7e0] sm:$0xff]
    %v931 = vld [vmem:[#allocation7 + $0x7e8] sm:$0xff]
    %v932 = vld [vmem:[#allocation7 + $0x7f0] sm:$0xff]
    %v933 = vld [vmem:[#allocation7 + $0x7f8] sm:$0xff]
    %v1190 = vunpack.c.l.b16 %v678
    %v1191 = vunpack.c.h.b16 %v678
    %v1192 = vunpack.c.l.b16 %v679
    %v1193 = vunpack.c.h.b16 %v679
    %v1194 = vunpack.c.l.b16 %v680
    %v1195 = vunpack.c.h.b16 %v680
    %v1196 = vunpack.c.l.b16 %v681
    %v1197 = vunpack.c.h.b16 %v681
    %v1198 = vunpack.c.l.b16 %v682
    %v1199 = vunpack.c.h.b16 %v682
    %v1200 = vunpack.c.l.b16 %v683
    %v1201 = vunpack.c.h.b16 %v683
    %v1202 = vunpack.c.l.b16 %v684
    %v1203 = vunpack.c.h.b16 %v684
    %v1204 = vunpack.c.l.b16 %v685
    %v1205 = vunpack.c.h.b16 %v685
    %v1206 = vunpack.c.l.b16 %v686
    %v1207 = vunpack.c.h.b16 %v686
    %v1208 = vunpack.c.l.b16 %v687
    %v1209 = vunpack.c.h.b16 %v687
    %v1210 = vunpack.c.l.b16 %v688
    %v1211 = vunpack.c.h.b16 %v688
    %v1212 = vunpack.c.l.b16 %v689
    %v1213 = vunpack.c.h.b16 %v689
    %v1214 = vunpack.c.l.b16 %v690
    %v1215 = vunpack.c.h.b16 %v690
    %v1216 = vunpack.c.l.b16 %v691
    %v1217 = vunpack.c.h.b16 %v691
    %v1218 = vunpack.c.l.b16 %v692
    %v1219 = vunpack.c.h.b16 %v692
    %v1220 = vunpack.c.l.b16 %v693
    %v1221 = vunpack.c.h.b16 %v693
    %v1222 = vunpack.c.l.b16 %v694
    %v1223 = vunpack.c.h.b16 %v694
    %v1224 = vunpack.c.l.b16 %v695
    %v1225 = vunpack.c.h.b16 %v695
    %v1226 = vunpack.c.l.b16 %v696
    %v1227 = vunpack.c.h.b16 %v696
    %v1228 = vunpack.c.l.b16 %v697
    %v1229 = vunpack.c.h.b16 %v697
    %v1230 = vunpack.c.l.b16 %v698
    %v1231 = vunpack.c.h.b16 %v698
    %v1232 = vunpack.c.l.b16 %v699
    %v1233 = vunpack.c.h.b16 %v699
    %v1234 = vunpack.c.l.b16 %v700
    %v1235 = vunpack.c.h.b16 %v700
    %v1236 = vunpack.c.l.b16 %v701
    %v1237 = vunpack.c.h.b16 %v701
    %v1238 = vunpack.c.l.b16 %v702
    %v1239 = vunpack.c.h.b16 %v702
    %v1240 = vunpack.c.l.b16 %v703
    %v1241 = vunpack.c.h.b16 %v703
    %v1242 = vunpack.c.l.b16 %v704
    %v1243 = vunpack.c.h.b16 %v704
    %v1244 = vunpack.c.l.b16 %v705
    %v1245 = vunpack.c.h.b16 %v705
    %v1246 = vunpack.c.l.b16 %v706
    %v1247 = vunpack.c.h.b16 %v706
    %v1248 = vunpack.c.l.b16 %v707
    %v1249 = vunpack.c.h.b16 %v707
    %v1250 = vunpack.c.l.b16 %v708
    %v1251 = vunpack.c.h.b16 %v708
    %v1252 = vunpack.c.l.b16 %v709
    %v1253 = vunpack.c.h.b16 %v709
    %v1254 = vunpack.c.l.b16 %v710
    %v1255 = vunpack.c.h.b16 %v710
    %v1256 = vunpack.c.l.b16 %v711
    %v1257 = vunpack.c.h.b16 %v711
    %v1258 = vunpack.c.l.b16 %v712
    %v1259 = vunpack.c.h.b16 %v712
    %v1260 = vunpack.c.l.b16 %v713
    %v1261 = vunpack.c.h.b16 %v713
    %v1262 = vunpack.c.l.b16 %v714
    %v1263 = vunpack.c.h.b16 %v714
    %v1264 = vunpack.c.l.b16 %v715
    %v1265 = vunpack.c.h.b16 %v715
    %v1266 = vunpack.c.l.b16 %v716
    %v1267 = vunpack.c.h.b16 %v716
    %v1268 = vunpack.c.l.b16 %v717
    %v1269 = vunpack.c.h.b16 %v717
    %v1270 = vunpack.c.l.b16 %v718
    %v1271 = vunpack.c.h.b16 %v718
    %v1272 = vunpack.c.l.b16 %v719
    %v1273 = vunpack.c.h.b16 %v719
    %v1274 = vunpack.c.l.b16 %v720
    %v1275 = vunpack.c.h.b16 %v720
    %v1276 = vunpack.c.l.b16 %v721
    %v1277 = vunpack.c.h.b16 %v721
    %v1278 = vunpack.c.l.b16 %v722
    %v1279 = vunpack.c.h.b16 %v722
    %v1280 = vunpack.c.l.b16 %v723
    %v1281 = vunpack.c.h.b16 %v723
    %v1282 = vunpack.c.l.b16 %v724
    %v1283 = vunpack.c.h.b16 %v724
    %v1284 = vunpack.c.l.b16 %v725
    %v1285 = vunpack.c.h.b16 %v725
    %v1286 = vunpack.c.l.b16 %v726
    %v1287 = vunpack.c.h.b16 %v726
    %v1288 = vunpack.c.l.b16 %v727
    %v1289 = vunpack.c.h.b16 %v727
    %v1290 = vunpack.c.l.b16 %v728
    %v1291 = vunpack.c.h.b16 %v728
    %v1292 = vunpack.c.l.b16 %v729
    %v1293 = vunpack.c.h.b16 %v729
    %v1294 = vunpack.c.l.b16 %v730
    %v1295 = vunpack.c.h.b16 %v730
    %v1296 = vunpack.c.l.b16 %v731
    %v1297 = vunpack.c.h.b16 %v731
    %v1298 = vunpack.c.l.b16 %v732
    %v1299 = vunpack.c.h.b16 %v732
    %v1300 = vunpack.c.l.b16 %v733
    %v1301 = vunpack.c.h.b16 %v733
    %v1302 = vunpack.c.l.b16 %v734
    %v1303 = vunpack.c.h.b16 %v734
    %v1304 = vunpack.c.l.b16 %v735
    %v1305 = vunpack.c.h.b16 %v735
    %v1306 = vunpack.c.l.b16 %v736
    %v1307 = vunpack.c.h.b16 %v736
    %v1308 = vunpack.c.l.b16 %v737
    %v1309 = vunpack.c.h.b16 %v737
    %v1310 = vunpack.c.l.b16 %v738
    %v1311 = vunpack.c.h.b16 %v738
    %v1312 = vunpack.c.l.b16 %v739
    %v1313 = vunpack.c.h.b16 %v739
    %v1314 = vunpack.c.l.b16 %v740
    %v1315 = vunpack.c.h.b16 %v740
    %v1316 = vunpack.c.l.b16 %v741
    %v1317 = vunpack.c.h.b16 %v741
    %v1318 = vunpack.c.l.b16 %v742
    %v1319 = vunpack.c.h.b16 %v742
    %v1320 = vunpack.c.l.b16 %v743
    %v1321 = vunpack.c.h.b16 %v743
    %v1322 = vunpack.c.l.b16 %v744
    %v1323 = vunpack.c.h.b16 %v744
    %v1324 = vunpack.c.l.b16 %v745
    %v1325 = vunpack.c.h.b16 %v745
    %v1326 = vunpack.c.l.b16 %v746
    %v1327 = vunpack.c.h.b16 %v746
    %v1328 = vunpack.c.l.b16 %v747
    %v1329 = vunpack.c.h.b16 %v747
    %v1330 = vunpack.c.l.b16 %v748
    %v1331 = vunpack.c.h.b16 %v748
    %v1332 = vunpack.c.l.b16 %v749
    %v1333 = vunpack.c.h.b16 %v749
    %v1334 = vunpack.c.l.b16 %v750
    %v1335 = vunpack.c.h.b16 %v750
    %v1336 = vunpack.c.l.b16 %v751
    %v1337 = vunpack.c.h.b16 %v751
    %v1338 = vunpack.c.l.b16 %v752
    %v1339 = vunpack.c.h.b16 %v752
    %v1340 = vunpack.c.l.b16 %v753
    %v1341 = vunpack.c.h.b16 %v753
    %v1342 = vunpack.c.l.b16 %v754
    %v1343 = vunpack.c.h.b16 %v754
    %v1344 = vunpack.c.l.b16 %v755
    %v1345 = vunpack.c.h.b16 %v755
    %v1346 = vunpack.c.l.b16 %v756
    %v1347 = vunpack.c.h.b16 %v756
    %v1348 = vunpack.c.l.b16 %v757
    %v1349 = vunpack.c.h.b16 %v757
    %v1350 = vunpack.c.l.b16 %v758
    %v1351 = vunpack.c.h.b16 %v758
    %v1352 = vunpack.c.l.b16 %v759
    %v1353 = vunpack.c.h.b16 %v759
    %v1354 = vunpack.c.l.b16 %v760
    %v1355 = vunpack.c.h.b16 %v760
    %v1356 = vunpack.c.l.b16 %v761
    %v1357 = vunpack.c.h.b16 %v761
    %v1358 = vunpack.c.l.b16 %v762
    %v1359 = vunpack.c.h.b16 %v762
    %v1360 = vunpack.c.l.b16 %v763
    %v1361 = vunpack.c.h.b16 %v763
    %v1362 = vunpack.c.l.b16 %v764
    %v1363 = vunpack.c.h.b16 %v764
    %v1364 = vunpack.c.l.b16 %v765
    %v1365 = vunpack.c.h.b16 %v765
    %v1366 = vunpack.c.l.b16 %v766
    %v1367 = vunpack.c.h.b16 %v766
    %v1368 = vunpack.c.l.b16 %v767
    %v1369 = vunpack.c.h.b16 %v767
    %v1370 = vunpack.c.l.b16 %v768
    %v1371 = vunpack.c.h.b16 %v768
    %v1372 = vunpack.c.l.b16 %v769
    %v1373 = vunpack.c.h.b16 %v769
    %v1374 = vunpack.c.l.b16 %v770
    %v1375 = vunpack.c.h.b16 %v770
    %v1376 = vunpack.c.l.b16 %v771
    %v1377 = vunpack.c.h.b16 %v771
    %v1378 = vunpack.c.l.b16 %v772
    %v1379 = vunpack.c.h.b16 %v772
    %v1380 = vunpack.c.l.b16 %v773
    %v1381 = vunpack.c.h.b16 %v773
    %v1382 = vunpack.c.l.b16 %v774
    %v1383 = vunpack.c.h.b16 %v774
    %v1384 = vunpack.c.l.b16 %v775
    %v1385 = vunpack.c.h.b16 %v775
    %v1386 = vunpack.c.l.b16 %v776
    %v1387 = vunpack.c.h.b16 %v776
    %v1388 = vunpack.c.l.b16 %v777
    %v1389 = vunpack.c.h.b16 %v777
    %v1390 = vunpack.c.l.b16 %v778
    %v1391 = vunpack.c.h.b16 %v778
    %v1392 = vunpack.c.l.b16 %v779
    %v1393 = vunpack.c.h.b16 %v779
    %v1394 = vunpack.c.l.b16 %v780
    %v1395 = vunpack.c.h.b16 %v780
    %v1396 = vunpack.c.l.b16 %v781
    %v1397 = vunpack.c.h.b16 %v781
    %v1398 = vunpack.c.l.b16 %v782
    %v1399 = vunpack.c.h.b16 %v782
    %v1400 = vunpack.c.l.b16 %v783
    %v1401 = vunpack.c.h.b16 %v783
    %v1402 = vunpack.c.l.b16 %v784
    %v1403 = vunpack.c.h.b16 %v784
    %v1404 = vunpack.c.l.b16 %v785
    %v1405 = vunpack.c.h.b16 %v785
    %v1406 = vunpack.c.l.b16 %v786
    %v1407 = vunpack.c.h.b16 %v786
    %v1408 = vunpack.c.l.b16 %v787
    %v1409 = vunpack.c.h.b16 %v787
    %v1410 = vunpack.c.l.b16 %v788
    %v1411 = vunpack.c.h.b16 %v788
    %v1412 = vunpack.c.l.b16 %v789
    %v1413 = vunpack.c.h.b16 %v789
    %v1414 = vunpack.c.l.b16 %v790
    %v1415 = vunpack.c.h.b16 %v790
    %v1416 = vunpack.c.l.b16 %v791
    %v1417 = vunpack.c.h.b16 %v791
    %v1418 = vunpack.c.l.b16 %v792
    %v1419 = vunpack.c.h.b16 %v792
    %v1420 = vunpack.c.l.b16 %v793
    %v1421 = vunpack.c.h.b16 %v793
    %v1422 = vunpack.c.l.b16 %v794
    %v1423 = vunpack.c.h.b16 %v794
    %v1424 = vunpack.c.l.b16 %v795
    %v1425 = vunpack.c.h.b16 %v795
    %v1426 = vunpack.c.l.b16 %v796
    %v1427 = vunpack.c.h.b16 %v796
    %v1428 = vunpack.c.l.b16 %v797
    %v1429 = vunpack.c.h.b16 %v797
    %v1430 = vunpack.c.l.b16 %v798
    %v1431 = vunpack.c.h.b16 %v798
    %v1432 = vunpack.c.l.b16 %v799
    %v1433 = vunpack.c.h.b16 %v799
    %v1434 = vunpack.c.l.b16 %v800
    %v1435 = vunpack.c.h.b16 %v800
    %v1436 = vunpack.c.l.b16 %v801
    %v1437 = vunpack.c.h.b16 %v801
    %v1438 = vunpack.c.l.b16 %v802
    %v1439 = vunpack.c.h.b16 %v802
    %v1440 = vunpack.c.l.b16 %v803
    %v1441 = vunpack.c.h.b16 %v803
    %v1442 = vunpack.c.l.b16 %v804
    %v1443 = vunpack.c.h.b16 %v804
    %v1444 = vunpack.c.l.b16 %v805
    %v1445 = vunpack.c.h.b16 %v805
    %v1446 = vunpack.c.l.b16 %v806
    %v1447 = vunpack.c.h.b16 %v806
    %v1448 = vunpack.c.l.b16 %v807
    %v1449 = vunpack.c.h.b16 %v807
    %v1450 = vunpack.c.l.b16 %v808
    %v1451 = vunpack.c.h.b16 %v808
    %v1452 = vunpack.c.l.b16 %v809
    %v1453 = vunpack.c.h.b16 %v809
    %v1454 = vunpack.c.l.b16 %v810
    %v1455 = vunpack.c.h.b16 %v810
    %v1456 = vunpack.c.l.b16 %v811
    %v1457 = vunpack.c.h.b16 %v811
    %v1458 = vunpack.c.l.b16 %v812
    %v1459 = vunpack.c.h.b16 %v812
    %v1460 = vunpack.c.l.b16 %v813
    %v1461 = vunpack.c.h.b16 %v813
    %v1462 = vunpack.c.l.b16 %v814
    %v1463 = vunpack.c.h.b16 %v814
    %v1464 = vunpack.c.l.b16 %v815
    %v1465 = vunpack.c.h.b16 %v815
    %v1466 = vunpack.c.l.b16 %v816
    %v1467 = vunpack.c.h.b16 %v816
    %v1468 = vunpack.c.l.b16 %v817
    %v1469 = vunpack.c.h.b16 %v817
    %v1470 = vunpack.c.l.b16 %v818
    %v1471 = vunpack.c.h.b16 %v818
    %v1472 = vunpack.c.l.b16 %v819
    %v1473 = vunpack.c.h.b16 %v819
    %v1474 = vunpack.c.l.b16 %v820
    %v1475 = vunpack.c.h.b16 %v820
    %v1476 = vunpack.c.l.b16 %v821
    %v1477 = vunpack.c.h.b16 %v821
    %v1478 = vunpack.c.l.b16 %v822
    %v1479 = vunpack.c.h.b16 %v822
    %v1480 = vunpack.c.l.b16 %v823
    %v1481 = vunpack.c.h.b16 %v823
    %v1482 = vunpack.c.l.b16 %v824
    %v1483 = vunpack.c.h.b16 %v824
    %v1484 = vunpack.c.l.b16 %v825
    %v1485 = vunpack.c.h.b16 %v825
    %v1486 = vunpack.c.l.b16 %v826
    %v1487 = vunpack.c.h.b16 %v826
    %v1488 = vunpack.c.l.b16 %v827
    %v1489 = vunpack.c.h.b16 %v827
    %v1490 = vunpack.c.l.b16 %v828
    %v1491 = vunpack.c.h.b16 %v828
    %v1492 = vunpack.c.l.b16 %v829
    %v1493 = vunpack.c.h.b16 %v829
    %v1494 = vunpack.c.l.b16 %v830
    %v1495 = vunpack.c.h.b16 %v830
    %v1496 = vunpack.c.l.b16 %v831
    %v1497 = vunpack.c.h.b16 %v831
    %v1498 = vunpack.c.l.b16 %v832
    %v1499 = vunpack.c.h.b16 %v832
    %v1500 = vunpack.c.l.b16 %v833
    %v1501 = vunpack.c.h.b16 %v833
    %v1502 = vunpack.c.l.b16 %v834
    %v1503 = vunpack.c.h.b16 %v834
    %v1504 = vunpack.c.l.b16 %v835
    %v1505 = vunpack.c.h.b16 %v835
    %v1506 = vunpack.c.l.b16 %v836
    %v1507 = vunpack.c.h.b16 %v836
    %v1508 = vunpack.c.l.b16 %v837
    %v1509 = vunpack.c.h.b16 %v837
    %v1510 = vunpack.c.l.b16 %v838
    %v1511 = vunpack.c.h.b16 %v838
    %v1512 = vunpack.c.l.b16 %v839
    %v1513 = vunpack.c.h.b16 %v839
    %v1514 = vunpack.c.l.b16 %v840
    %v1515 = vunpack.c.h.b16 %v840
    %v1516 = vunpack.c.l.b16 %v841
    %v1517 = vunpack.c.h.b16 %v841
    %v1518 = vunpack.c.l.b16 %v842
    %v1519 = vunpack.c.h.b16 %v842
    %v1520 = vunpack.c.l.b16 %v843
    %v1521 = vunpack.c.h.b16 %v843
    %v1522 = vunpack.c.l.b16 %v844
    %v1523 = vunpack.c.h.b16 %v844
    %v1524 = vunpack.c.l.b16 %v845
    %v1525 = vunpack.c.h.b16 %v845
    %v1526 = vunpack.c.l.b16 %v846
    %v1527 = vunpack.c.h.b16 %v846
    %v1528 = vunpack.c.l.b16 %v847
    %v1529 = vunpack.c.h.b16 %v847
    %v1530 = vunpack.c.l.b16 %v848
    %v1531 = vunpack.c.h.b16 %v848
    %v1532 = vunpack.c.l.b16 %v849
    %v1533 = vunpack.c.h.b16 %v849
    %v1534 = vunpack.c.l.b16 %v850
    %v1535 = vunpack.c.h.b16 %v850
    %v1536 = vunpack.c.l.b16 %v851
    %v1537 = vunpack.c.h.b16 %v851
    %v1538 = vunpack.c.l.b16 %v852
    %v1539 = vunpack.c.h.b16 %v852
    %v1540 = vunpack.c.l.b16 %v853
    %v1541 = vunpack.c.h.b16 %v853
    %v1542 = vunpack.c.l.b16 %v854
    %v1543 = vunpack.c.h.b16 %v854
    %v1544 = vunpack.c.l.b16 %v855
    %v1545 = vunpack.c.h.b16 %v855
    %v1546 = vunpack.c.l.b16 %v856
    %v1547 = vunpack.c.h.b16 %v856
    %v1548 = vunpack.c.l.b16 %v857
    %v1549 = vunpack.c.h.b16 %v857
    %v1550 = vunpack.c.l.b16 %v858
    %v1551 = vunpack.c.h.b16 %v858
    %v1552 = vunpack.c.l.b16 %v859
    %v1553 = vunpack.c.h.b16 %v859
    %v1554 = vunpack.c.l.b16 %v860
    %v1555 = vunpack.c.h.b16 %v860
    %v1556 = vunpack.c.l.b16 %v861
    %v1557 = vunpack.c.h.b16 %v861
    %v1558 = vunpack.c.l.b16 %v862
    %v1559 = vunpack.c.h.b16 %v862
    %v1560 = vunpack.c.l.b16 %v863
    %v1561 = vunpack.c.h.b16 %v863
    %v1562 = vunpack.c.l.b16 %v864
    %v1563 = vunpack.c.h.b16 %v864
    %v1564 = vunpack.c.l.b16 %v865
    %v1565 = vunpack.c.h.b16 %v865
    %v1566 = vunpack.c.l.b16 %v866
    %v1567 = vunpack.c.h.b16 %v866
    %v1568 = vunpack.c.l.b16 %v867
    %v1569 = vunpack.c.h.b16 %v867
    %v1570 = vunpack.c.l.b16 %v868
    %v1571 = vunpack.c.h.b16 %v868
    %v1572 = vunpack.c.l.b16 %v869
    %v1573 = vunpack.c.h.b16 %v869
    %v1574 = vunpack.c.l.b16 %v870
    %v1575 = vunpack.c.h.b16 %v870
    %v1576 = vunpack.c.l.b16 %v871
    %v1577 = vunpack.c.h.b16 %v871
    %v1578 = vunpack.c.l.b16 %v872
    %v1579 = vunpack.c.h.b16 %v872
    %v1580 = vunpack.c.l.b16 %v873
    %v1581 = vunpack.c.h.b16 %v873
    %v1582 = vunpack.c.l.b16 %v874
    %v1583 = vunpack.c.h.b16 %v874
    %v1584 = vunpack.c.l.b16 %v875
    %v1585 = vunpack.c.h.b16 %v875
    %v1586 = vunpack.c.l.b16 %v876
    %v1587 = vunpack.c.h.b16 %v876
    %v1588 = vunpack.c.l.b16 %v877
    %v1589 = vunpack.c.h.b16 %v877
    %v1590 = vunpack.c.l.b16 %v878
    %v1591 = vunpack.c.h.b16 %v878
    %v1592 = vunpack.c.l.b16 %v879
    %v1593 = vunpack.c.h.b16 %v879
    %v1594 = vunpack.c.l.b16 %v880
    %v1595 = vunpack.c.h.b16 %v880
    %v1596 = vunpack.c.l.b16 %v881
    %v1597 = vunpack.c.h.b16 %v881
    %v1598 = vunpack.c.l.b16 %v882
    %v1599 = vunpack.c.h.b16 %v882
    %v1600 = vunpack.c.l.b16 %v883
    %v1601 = vunpack.c.h.b16 %v883
    %v1602 = vunpack.c.l.b16 %v884
    %v1603 = vunpack.c.h.b16 %v884
    %v1604 = vunpack.c.l.b16 %v885
    %v1605 = vunpack.c.h.b16 %v885
    %v1606 = vunpack.c.l.b16 %v886
    %v1607 = vunpack.c.h.b16 %v886
    %v1608 = vunpack.c.l.b16 %v887
    %v1609 = vunpack.c.h.b16 %v887
    %v1610 = vunpack.c.l.b16 %v888
    %v1611 = vunpack.c.h.b16 %v888
    %v1612 = vunpack.c.l.b16 %v889
    %v1613 = vunpack.c.h.b16 %v889
    %v1614 = vunpack.c.l.b16 %v890
    %v1615 = vunpack.c.h.b16 %v890
    %v1616 = vunpack.c.l.b16 %v891
    %v1617 = vunpack.c.h.b16 %v891
    %v1618 = vunpack.c.l.b16 %v892
    %v1619 = vunpack.c.h.b16 %v892
    %v1620 = vunpack.c.l.b16 %v893
    %v1621 = vunpack.c.h.b16 %v893
    %v1622 = vunpack.c.l.b16 %v894
    %v1623 = vunpack.c.h.b16 %v894
    %v1624 = vunpack.c.l.b16 %v895
    %v1625 = vunpack.c.h.b16 %v895
    %v1626 = vunpack.c.l.b16 %v896
    %v1627 = vunpack.c.h.b16 %v896
    %v1628 = vunpack.c.l.b16 %v897
    %v1629 = vunpack.c.h.b16 %v897
    %v1630 = vunpack.c.l.b16 %v898
    %v1631 = vunpack.c.h.b16 %v898
    %v1632 = vunpack.c.l.b16 %v899
    %v1633 = vunpack.c.h.b16 %v899
    %v1634 = vunpack.c.l.b16 %v900
    %v1635 = vunpack.c.h.b16 %v900
    %v1636 = vunpack.c.l.b16 %v901
    %v1637 = vunpack.c.h.b16 %v901
    %v1638 = vunpack.c.l.b16 %v902
    %v1639 = vunpack.c.h.b16 %v902
    %v1640 = vunpack.c.l.b16 %v903
    %v1641 = vunpack.c.h.b16 %v903
    %v1642 = vunpack.c.l.b16 %v904
    %v1643 = vunpack.c.h.b16 %v904
    %v1644 = vunpack.c.l.b16 %v905
    %v1645 = vunpack.c.h.b16 %v905
    %v1646 = vunpack.c.l.b16 %v906
    %v1647 = vunpack.c.h.b16 %v906
    %v1648 = vunpack.c.l.b16 %v907
    %v1649 = vunpack.c.h.b16 %v907
    %v1650 = vunpack.c.l.b16 %v908
    %v1651 = vunpack.c.h.b16 %v908
    %v1652 = vunpack.c.l.b16 %v909
    %v1653 = vunpack.c.h.b16 %v909
    %v1654 = vunpack.c.l.b16 %v910
    %v1655 = vunpack.c.h.b16 %v910
    %v1656 = vunpack.c.l.b16 %v911
    %v1657 = vunpack.c.h.b16 %v911
    %v1658 = vunpack.c.l.b16 %v912
    %v1659 = vunpack.c.h.b16 %v912
    %v1660 = vunpack.c.l.b16 %v913
    %v1661 = vunpack.c.h.b16 %v913
    %v1662 = vunpack.c.l.b16 %v914
    %v1663 = vunpack.c.h.b16 %v914
    %v1664 = vunpack.c.l.b16 %v915
    %v1665 = vunpack.c.h.b16 %v915
    %v1666 = vunpack.c.l.b16 %v916
    %v1667 = vunpack.c.h.b16 %v916
    %v1668 = vunpack.c.l.b16 %v917
    %v1669 = vunpack.c.h.b16 %v917
    %v1670 = vunpack.c.l.b16 %v918
    %v1671 = vunpack.c.h.b16 %v918
    %v1672 = vunpack.c.l.b16 %v919
    %v1673 = vunpack.c.h.b16 %v919
    %v1674 = vunpack.c.l.b16 %v920
    %v1675 = vunpack.c.h.b16 %v920
    %v1676 = vunpack.c.l.b16 %v921
    %v1677 = vunpack.c.h.b16 %v921
    %v1678 = vunpack.c.l.b16 %v922
    %v1679 = vunpack.c.h.b16 %v922
    %v1680 = vunpack.c.l.b16 %v923
    %v1681 = vunpack.c.h.b16 %v923
    %v1682 = vunpack.c.l.b16 %v924
    %v1683 = vunpack.c.h.b16 %v924
    %v1684 = vunpack.c.l.b16 %v925
    %v1685 = vunpack.c.h.b16 %v925
    %v1686 = vunpack.c.l.b16 %v926
    %v1687 = vunpack.c.h.b16 %v926
    %v1688 = vunpack.c.l.b16 %v927
    %v1689 = vunpack.c.h.b16 %v927
    %v1690 = vunpack.c.l.b16 %v928
    %v1691 = vunpack.c.h.b16 %v928
    %v1692 = vunpack.c.l.b16 %v929
    %v1693 = vunpack.c.h.b16 %v929
    %v1694 = vunpack.c.l.b16 %v930
    %v1695 = vunpack.c.h.b16 %v930
    %v1696 = vunpack.c.l.b16 %v931
    %v1697 = vunpack.c.h.b16 %v931
    %v1698 = vunpack.c.l.b16 %v932
    %v1699 = vunpack.c.h.b16 %v932
    %v1700 = vunpack.c.l.b16 %v933
    %v1701 = vunpack.c.h.b16 %v933
    %v1702 = vpack.c.b16 %v1194, %v1190
    %v1703 = vpack.c.b16 %v1195, %v1191
    %v1704 = vpack.c.b16 %v1196, %v1192
    %v1705 = vpack.c.b16 %v1197, %v1193
    %v1706 = vpack.c.b16 %v1202, %v1198
    %v1707 = vpack.c.b16 %v1203, %v1199
    %v1708 = vpack.c.b16 %v1204, %v1200
    %v1709 = vpack.c.b16 %v1205, %v1201
    %v1710 = vpack.c.b16 %v1210, %v1206
    %v1711 = vpack.c.b16 %v1211, %v1207
    %v1712 = vpack.c.b16 %v1212, %v1208
    %v1713 = vpack.c.b16 %v1213, %v1209
    %v1714 = vpack.c.b16 %v1218, %v1214
    %v1715 = vpack.c.b16 %v1219, %v1215
    %v1716 = vpack.c.b16 %v1220, %v1216
    %v1717 = vpack.c.b16 %v1221, %v1217
    %v1718 = vpack.c.b16 %v1226, %v1222
    %v1719 = vpack.c.b16 %v1227, %v1223
    %v1720 = vpack.c.b16 %v1228, %v1224
    %v1721 = vpack.c.b16 %v1229, %v1225
    %v1722 = vpack.c.b16 %v1234, %v1230
    %v1723 = vpack.c.b16 %v1235, %v1231
    %v1724 = vpack.c.b16 %v1236, %v1232
    %v1725 = vpack.c.b16 %v1237, %v1233
    %v1726 = vpack.c.b16 %v1242, %v1238
    %v1727 = vpack.c.b16 %v1243, %v1239
    %v1728 = vpack.c.b16 %v1244, %v1240
    %v1729 = vpack.c.b16 %v1245, %v1241
    %v1730 = vpack.c.b16 %v1250, %v1246
    %v1731 = vpack.c.b16 %v1251, %v1247
    %v1732 = vpack.c.b16 %v1252, %v1248
    %v1733 = vpack.c.b16 %v1253, %v1249
    %v1734 = vpack.c.b16 %v1258, %v1254
    %v1735 = vpack.c.b16 %v1259, %v1255
    %v1736 = vpack.c.b16 %v1260, %v1256
    %v1737 = vpack.c.b16 %v1261, %v1257
    %v1738 = vpack.c.b16 %v1266, %v1262
    %v1739 = vpack.c.b16 %v1267, %v1263
    %v1740 = vpack.c.b16 %v1268, %v1264
    %v1741 = vpack.c.b16 %v1269, %v1265
    %v1742 = vpack.c.b16 %v1274, %v1270
    %v1743 = vpack.c.b16 %v1275, %v1271
    %v1744 = vpack.c.b16 %v1276, %v1272
    %v1745 = vpack.c.b16 %v1277, %v1273
    %v1746 = vpack.c.b16 %v1282, %v1278
    %v1747 = vpack.c.b16 %v1283, %v1279
    %v1748 = vpack.c.b16 %v1284, %v1280
    %v1749 = vpack.c.b16 %v1285, %v1281
    %v1750 = vpack.c.b16 %v1290, %v1286
    %v1751 = vpack.c.b16 %v1291, %v1287
    %v1752 = vpack.c.b16 %v1292, %v1288
    %v1753 = vpack.c.b16 %v1293, %v1289
    %v1754 = vpack.c.b16 %v1298, %v1294
    %v1755 = vpack.c.b16 %v1299, %v1295
    %v1756 = vpack.c.b16 %v1300, %v1296
    %v1757 = vpack.c.b16 %v1301, %v1297
    %v1758 = vpack.c.b16 %v1306, %v1302
    %v1759 = vpack.c.b16 %v1307, %v1303
    %v1760 = vpack.c.b16 %v1308, %v1304
    %v1761 = vpack.c.b16 %v1309, %v1305
    %v1762 = vpack.c.b16 %v1314, %v1310
    %v1763 = vpack.c.b16 %v1315, %v1311
    %v1764 = vpack.c.b16 %v1316, %v1312
    %v1765 = vpack.c.b16 %v1317, %v1313
    %v1766 = vpack.c.b16 %v1322, %v1318
    %v1767 = vpack.c.b16 %v1323, %v1319
    %v1768 = vpack.c.b16 %v1324, %v1320
    %v1769 = vpack.c.b16 %v1325, %v1321
    %v1770 = vpack.c.b16 %v1330, %v1326
    %v1771 = vpack.c.b16 %v1331, %v1327
    %v1772 = vpack.c.b16 %v1332, %v1328
    %v1773 = vpack.c.b16 %v1333, %v1329
    %v1774 = vpack.c.b16 %v1338, %v1334
    %v1775 = vpack.c.b16 %v1339, %v1335
    %v1776 = vpack.c.b16 %v1340, %v1336
    %v1777 = vpack.c.b16 %v1341, %v1337
    %v1778 = vpack.c.b16 %v1346, %v1342
    %v1779 = vpack.c.b16 %v1347, %v1343
    %v1780 = vpack.c.b16 %v1348, %v1344
    %v1781 = vpack.c.b16 %v1349, %v1345
    %v1782 = vpack.c.b16 %v1354, %v1350
    %v1783 = vpack.c.b16 %v1355, %v1351
    %v1784 = vpack.c.b16 %v1356, %v1352
    %v1785 = vpack.c.b16 %v1357, %v1353
    %v1786 = vpack.c.b16 %v1362, %v1358
    %v1787 = vpack.c.b16 %v1363, %v1359
    %v1788 = vpack.c.b16 %v1364, %v1360
    %v1789 = vpack.c.b16 %v1365, %v1361
    %v1790 = vpack.c.b16 %v1370, %v1366
    %v1791 = vpack.c.b16 %v1371, %v1367
    %v1792 = vpack.c.b16 %v1372, %v1368
    %v1793 = vpack.c.b16 %v1373, %v1369
    %v1794 = vpack.c.b16 %v1378, %v1374
    %v1795 = vpack.c.b16 %v1379, %v1375
    %v1796 = vpack.c.b16 %v1380, %v1376
    %v1797 = vpack.c.b16 %v1381, %v1377
    %v1798 = vpack.c.b16 %v1386, %v1382
    %v1799 = vpack.c.b16 %v1387, %v1383
    %v1800 = vpack.c.b16 %v1388, %v1384
    %v1801 = vpack.c.b16 %v1389, %v1385
    %v1802 = vpack.c.b16 %v1394, %v1390
    %v1803 = vpack.c.b16 %v1395, %v1391
    %v1804 = vpack.c.b16 %v1396, %v1392
    %v1805 = vpack.c.b16 %v1397, %v1393
    %v1806 = vpack.c.b16 %v1402, %v1398
    %v1807 = vpack.c.b16 %v1403, %v1399
    %v1808 = vpack.c.b16 %v1404, %v1400
    %v1809 = vpack.c.b16 %v1405, %v1401
    %v1810 = vpack.c.b16 %v1410, %v1406
    %v1811 = vpack.c.b16 %v1411, %v1407
    %v1812 = vpack.c.b16 %v1412, %v1408
    %v1813 = vpack.c.b16 %v1413, %v1409
    %v1814 = vpack.c.b16 %v1418, %v1414
    %v1815 = vpack.c.b16 %v1419, %v1415
    %v1816 = vpack.c.b16 %v1420, %v1416
    %v1817 = vpack.c.b16 %v1421, %v1417
    %v1818 = vpack.c.b16 %v1426, %v1422
    %v1819 = vpack.c.b16 %v1427, %v1423
    %v1820 = vpack.c.b16 %v1428, %v1424
    %v1821 = vpack.c.b16 %v1429, %v1425
    %v1822 = vpack.c.b16 %v1434, %v1430
    %v1823 = vpack.c.b16 %v1435, %v1431
    %v1824 = vpack.c.b16 %v1436, %v1432
    %v1825 = vpack.c.b16 %v1437, %v1433
    %v1826 = vpack.c.b16 %v1442, %v1438
    %v1827 = vpack.c.b16 %v1443, %v1439
    %v1828 = vpack.c.b16 %v1444, %v1440
    %v1829 = vpack.c.b16 %v1445, %v1441
    %v1830 = vpack.c.b16 %v1450, %v1446
    %v1831 = vpack.c.b16 %v1451, %v1447
    %v1832 = vpack.c.b16 %v1452, %v1448
    %v1833 = vpack.c.b16 %v1453, %v1449
    %v1834 = vpack.c.b16 %v1458, %v1454
    %v1835 = vpack.c.b16 %v1459, %v1455
    %v1836 = vpack.c.b16 %v1460, %v1456
    %v1837 = vpack.c.b16 %v1461, %v1457
    %v1838 = vpack.c.b16 %v1466, %v1462
    %v1839 = vpack.c.b16 %v1467, %v1463
    %v1840 = vpack.c.b16 %v1468, %v1464
    %v1841 = vpack.c.b16 %v1469, %v1465
    %v1842 = vpack.c.b16 %v1474, %v1470
    %v1843 = vpack.c.b16 %v1475, %v1471
    %v1844 = vpack.c.b16 %v1476, %v1472
    %v1845 = vpack.c.b16 %v1477, %v1473
    %v1846 = vpack.c.b16 %v1482, %v1478
    %v1847 = vpack.c.b16 %v1483, %v1479
    %v1848 = vpack.c.b16 %v1484, %v1480
    %v1849 = vpack.c.b16 %v1485, %v1481
    %v1850 = vpack.c.b16 %v1490, %v1486
    %v1851 = vpack.c.b16 %v1491, %v1487
    %v1852 = vpack.c.b16 %v1492, %v1488
    %v1853 = vpack.c.b16 %v1493, %v1489
    %v1854 = vpack.c.b16 %v1498, %v1494
    %v1855 = vpack.c.b16 %v1499, %v1495
    %v1856 = vpack.c.b16 %v1500, %v1496
    %v1857 = vpack.c.b16 %v1501, %v1497
    %v1858 = vpack.c.b16 %v1506, %v1502
    %v1859 = vpack.c.b16 %v1507, %v1503
    %v1860 = vpack.c.b16 %v1508, %v1504
    %v1861 = vpack.c.b16 %v1509, %v1505
    %v1862 = vpack.c.b16 %v1514, %v1510
    %v1863 = vpack.c.b16 %v1515, %v1511
    %v1864 = vpack.c.b16 %v1516, %v1512
    %v1865 = vpack.c.b16 %v1517, %v1513
    %v1866 = vpack.c.b16 %v1522, %v1518
    %v1867 = vpack.c.b16 %v1523, %v1519
    %v1868 = vpack.c.b16 %v1524, %v1520
    %v1869 = vpack.c.b16 %v1525, %v1521
    %v1870 = vpack.c.b16 %v1530, %v1526
    %v1871 = vpack.c.b16 %v1531, %v1527
    %v1872 = vpack.c.b16 %v1532, %v1528
    %v1873 = vpack.c.b16 %v1533, %v1529
    %v1874 = vpack.c.b16 %v1538, %v1534
    %v1875 = vpack.c.b16 %v1539, %v1535
    %v1876 = vpack.c.b16 %v1540, %v1536
    %v1877 = vpack.c.b16 %v1541, %v1537
    %v1878 = vpack.c.b16 %v1546, %v1542
    %v1879 = vpack.c.b16 %v1547, %v1543
    %v1880 = vpack.c.b16 %v1548, %v1544
    %v1881 = vpack.c.b16 %v1549, %v1545
    %v1882 = vpack.c.b16 %v1554, %v1550
    %v1883 = vpack.c.b16 %v1555, %v1551
    %v1884 = vpack.c.b16 %v1556, %v1552
    %v1885 = vpack.c.b16 %v1557, %v1553
    %v1886 = vpack.c.b16 %v1562, %v1558
    %v1887 = vpack.c.b16 %v1563, %v1559
    %v1888 = vpack.c.b16 %v1564, %v1560
    %v1889 = vpack.c.b16 %v1565, %v1561
    %v1890 = vpack.c.b16 %v1570, %v1566
    %v1891 = vpack.c.b16 %v1571, %v1567
    %v1892 = vpack.c.b16 %v1572, %v1568
    %v1893 = vpack.c.b16 %v1573, %v1569
    %v1894 = vpack.c.b16 %v1578, %v1574
    %v1895 = vpack.c.b16 %v1579, %v1575
    %v1896 = vpack.c.b16 %v1580, %v1576
    %v1897 = vpack.c.b16 %v1581, %v1577
    %v1898 = vpack.c.b16 %v1586, %v1582
    %v1899 = vpack.c.b16 %v1587, %v1583
    %v1900 = vpack.c.b16 %v1588, %v1584
    %v1901 = vpack.c.b16 %v1589, %v1585
    %v1902 = vpack.c.b16 %v1594, %v1590
    %v1903 = vpack.c.b16 %v1595, %v1591
    %v1904 = vpack.c.b16 %v1596, %v1592
    %v1905 = vpack.c.b16 %v1597, %v1593
    %v1906 = vpack.c.b16 %v1602, %v1598
    %v1907 = vpack.c.b16 %v1603, %v1599
    %v1908 = vpack.c.b16 %v1604, %v1600
    %v1909 = vpack.c.b16 %v1605, %v1601
    %v1910 = vpack.c.b16 %v1610, %v1606
    %v1911 = vpack.c.b16 %v1611, %v1607
    %v1912 = vpack.c.b16 %v1612, %v1608
    %v1913 = vpack.c.b16 %v1613, %v1609
    %v1914 = vpack.c.b16 %v1618, %v1614
    %v1915 = vpack.c.b16 %v1619, %v1615
    %v1916 = vpack.c.b16 %v1620, %v1616
    %v1917 = vpack.c.b16 %v1621, %v1617
    %v1918 = vpack.c.b16 %v1626, %v1622
    %v1919 = vpack.c.b16 %v1627, %v1623
    %v1920 = vpack.c.b16 %v1628, %v1624
    %v1921 = vpack.c.b16 %v1629, %v1625
    %v1922 = vpack.c.b16 %v1634, %v1630
    %v1923 = vpack.c.b16 %v1635, %v1631
    %v1924 = vpack.c.b16 %v1636, %v1632
    %v1925 = vpack.c.b16 %v1637, %v1633
    %v1926 = vpack.c.b16 %v1642, %v1638
    %v1927 = vpack.c.b16 %v1643, %v1639
    %v1928 = vpack.c.b16 %v1644, %v1640
    %v1929 = vpack.c.b16 %v1645, %v1641
    %v1930 = vpack.c.b16 %v1650, %v1646
    %v1931 = vpack.c.b16 %v1651, %v1647
    %v1932 = vpack.c.b16 %v1652, %v1648
    %v1933 = vpack.c.b16 %v1653, %v1649
    %v1934 = vpack.c.b16 %v1658, %v1654
    %v1935 = vpack.c.b16 %v1659, %v1655
    %v1936 = vpack.c.b16 %v1660, %v1656
    %v1937 = vpack.c.b16 %v1661, %v1657
    %v1938 = vpack.c.b16 %v1666, %v1662
    %v1939 = vpack.c.b16 %v1667, %v1663
    %v1940 = vpack.c.b16 %v1668, %v1664
    %v1941 = vpack.c.b16 %v1669, %v1665
    %v1942 = vpack.c.b16 %v1674, %v1670
    %v1943 = vpack.c.b16 %v1675, %v1671
    %v1944 = vpack.c.b16 %v1676, %v1672
    %v1945 = vpack.c.b16 %v1677, %v1673
    %v1946 = vpack.c.b16 %v1682, %v1678
    %v1947 = vpack.c.b16 %v1683, %v1679
    %v1948 = vpack.c.b16 %v1684, %v1680
    %v1949 = vpack.c.b16 %v1685, %v1681
    %v1950 = vpack.c.b16 %v1690, %v1686
    %v1951 = vpack.c.b16 %v1691, %v1687
    %v1952 = vpack.c.b16 %v1692, %v1688
    %v1953 = vpack.c.b16 %v1693, %v1689
    %v1954 = vpack.c.b16 %v1698, %v1694
    %v1955 = vpack.c.b16 %v1699, %v1695
    %v1956 = vpack.c.b16 %v1700, %v1696
    %v1957 = vpack.c.b16 %v1701, %v1697
    %2214 = vmatprep.subr.bf16.mxu0 %v1703
    %2215 = vmatpush1.bf16.msra.mxu0 %v1702
    %2216 = vmatprep.subr.bf16.mxu0 %v1707
    %2217 = vmatpush1.bf16.msra.mxu0 %v1706
    %2218 = vmatprep.subr.bf16.mxu0 %v1711
    %2219 = vmatpush1.bf16.msra.mxu0 %v1710
    %2220 = vmatprep.subr.bf16.mxu0 %v1715
    %2221 = vmatpush1.bf16.msra.mxu0 %v1714
    %2222 = vmatprep.subr.bf16.mxu0 %v1719
    %2223 = vmatpush1.bf16.msra.mxu0 %v1718
    %2224 = vmatprep.subr.bf16.mxu0 %v1723
    %2225 = vmatpush1.bf16.msra.mxu0 %v1722
    %2226 = vmatprep.subr.bf16.mxu0 %v1727
    %2227 = vmatpush1.bf16.msra.mxu0 %v1726
    %2228 = vmatprep.subr.bf16.mxu0 %v1731
    %2229 = vmatpush1.bf16.msra.mxu0 %v1730
    %2230 = vmatprep.subr.bf16.mxu0 %v1735
    %2231 = vmatpush1.bf16.msra.mxu0 %v1734
    %2232 = vmatprep.subr.bf16.mxu0 %v1739
    %2233 = vmatpush1.bf16.msra.mxu0 %v1738
    %2234 = vmatprep.subr.bf16.mxu0 %v1743
    %2235 = vmatpush1.bf16.msra.mxu0 %v1742
    %2236 = vmatprep.subr.bf16.mxu0 %v1747
    %2237 = vmatpush1.bf16.msra.mxu0 %v1746
    %2238 = vmatprep.subr.bf16.mxu0 %v1751
    %2239 = vmatpush1.bf16.msra.mxu0 %v1750
    %2240 = vmatprep.subr.bf16.mxu0 %v1755
    %2241 = vmatpush1.bf16.msra.mxu0 %v1754
    %2242 = vmatprep.subr.bf16.mxu0 %v1759
    %2243 = vmatpush1.bf16.msra.mxu0 %v1758
    %2244 = vmatprep.subr.bf16.mxu0 %v1763
    %2245 = vmatpush1.bf16.msra.mxu0 %v1762
    %2246 = vmatprep.mubr.bf16.mxu0 %v671
    %2247 = vmatmul.mubr.bf16.gmra.mrb[0].mxu0 %v670
    %v2248 = vpop.f32.mrb[0].mxu0
    %v2249 = vadd.f32 0.0, %v2248
    %v2250 = vpop.f32.mrb[0].mxu0
    %v2251 = vadd.f32 0.0, %v2250
    %v2252 = vpop.f32.mrb[0].mxu0
    %v2253 = vpop.f32.mrb[0].mxu0
    %2254 = vdwg.mxu0
    %2255 = vmatprep.subr.bf16.mxu0 %v1767
    %2256 = vmatpush1.bf16.msra.mxu0 %v1766
    %2257 = vmatprep.subr.bf16.mxu0 %v1771
    %2258 = vmatpush1.bf16.msra.mxu0 %v1770
    %2259 = vmatprep.subr.bf16.mxu0 %v1775
    %2260 = vmatpush1.bf16.msra.mxu0 %v1774
    %2261 = vmatprep.subr.bf16.mxu0 %v1779
    %2262 = vmatpush1.bf16.msra.mxu0 %v1778
    %2263 = vmatprep.subr.bf16.mxu0 %v1783
    %2264 = vmatpush1.bf16.msra.mxu0 %v1782
    %2265 = vmatprep.subr.bf16.mxu0 %v1787
    %2266 = vmatpush1.bf16.msra.mxu0 %v1786
    %2267 = vmatprep.subr.bf16.mxu0 %v1791
    %2268 = vmatpush1.bf16.msra.mxu0 %v1790
    %2269 = vmatprep.subr.bf16.mxu0 %v1795
    %2270 = vmatpush1.bf16.msra.mxu0 %v1794
    %2271 = vmatprep.subr.bf16.mxu0 %v1799
    %2272 = vmatpush1.bf16.msra.mxu0 %v1798
    %2273 = vmatprep.subr.bf16.mxu0 %v1803
    %2274 = vmatpush1.bf16.msra.mxu0 %v1802
    %2275 = vmatprep.subr.bf16.mxu0 %v1807
    %2276 = vmatpush1.bf16.msra.mxu0 %v1806
    %2277 = vmatprep.subr.bf16.mxu0 %v1811
    %2278 = vmatpush1.bf16.msra.mxu0 %v1810
    %2279 = vmatprep.subr.bf16.mxu0 %v1815
    %2280 = vmatpush1.bf16.msra.mxu0 %v1814
    %2281 = vmatprep.subr.bf16.mxu0 %v1819
    %2282 = vmatpush1.bf16.msra.mxu0 %v1818
    %2283 = vmatprep.subr.bf16.mxu0 %v1823
    %2284 = vmatpush1.bf16.msra.mxu0 %v1822
    %2285 = vmatprep.subr.bf16.mxu0 %v1827
    %2286 = vmatpush1.bf16.msra.mxu0 %v1826
    %2287 = vmatprep.mubr.bf16.mxu0 %v673
    %2288 = vmatmul.mubr.bf16.gmra.mrb[0].mxu0 %v672
    %v2289 = vpop.f32.mrb[0].mxu0
    %v2290 = vadd.f32 %v2249, %v2289
    %v2291 = vpop.f32.mrb[0].mxu0
    %v2292 = vadd.f32 %v2251, %v2291
    %v2293 = vpop.f32.mrb[0].mxu0
    %v2294 = vpop.f32.mrb[0].mxu0
    %2295 = vdwg.mxu0
    %2296 = vmatprep.subr.bf16.mxu0 %v1831
    %2297 = vmatpush1.bf16.msra.mxu0 %v1830
    %2298 = vmatprep.subr.bf16.mxu0 %v1835
    %2299 = vmatpush1.bf16.msra.mxu0 %v1834
    %2300 = vmatprep.subr.bf16.mxu0 %v1839
    %2301 = vmatpush1.bf16.msra.mxu0 %v1838
    %2302 = vmatprep.subr.bf16.mxu0 %v1843
    %2303 = vmatpush1.bf16.msra.mxu0 %v1842
    %2304 = vmatprep.subr.bf16.mxu0 %v1847
    %2305 = vmatpush1.bf16.msra.mxu0 %v1846
    %2306 = vmatprep.subr.bf16.mxu0 %v1851
    %2307 = vmatpush1.bf16.msra.mxu0 %v1850
    %2308 = vmatprep.subr.bf16.mxu0 %v1855
    %2309 = vmatpush1.bf16.msra.mxu0 %v1854
    %2310 = vmatprep.subr.bf16.mxu0 %v1859
    %2311 = vmatpush1.bf16.msra.mxu0 %v1858
    %2312 = vmatprep.subr.bf16.mxu0 %v1863
    %2313 = vmatpush1.bf16.msra.mxu0 %v1862
    %2314 = vmatprep.subr.bf16.mxu0 %v1867
    %2315 = vmatpush1.bf16.msra.mxu0 %v1866
    %2316 = vmatprep.subr.bf16.mxu0 %v1871
    %2317 = vmatpush1.bf16.msra.mxu0 %v1870
    %2318 = vmatprep.subr.bf16.mxu0 %v1875
    %2319 = vmatpush1.bf16.msra.mxu0 %v1874
    %2320 = vmatprep.subr.bf16.mxu0 %v1879
    %2321 = vmatpush1.bf16.msra.mxu0 %v1878
    %2322 = vmatprep.subr.bf16.mxu0 %v1883
    %2323 = vmatpush1.bf16.msra.mxu0 %v1882
    %2324 = vmatprep.subr.bf16.mxu0 %v1887
    %2325 = vmatpush1.bf16.msra.mxu0 %v1886
    %2326 = vmatprep.subr.bf16.mxu0 %v1891
    %2327 = vmatpush1.bf16.msra.mxu0 %v1890
    %2328 = vmatprep.mubr.bf16.mxu0 %v675
    %2329 = vmatmul.mubr.bf16.gmra.mrb[0].mxu0 %v674
    %v2330 = vpop.f32.mrb[0].mxu0
    %v2331 = vadd.f32 %v2290, %v2330
    %v2332 = vpop.f32.mrb[0].mxu0
    %v2333 = vadd.f32 %v2292, %v2332
    %v2334 = vpop.f32.mrb[0].mxu0
    %v2335 = vpop.f32.mrb[0].mxu0
    %2336 = vdwg.mxu0
    %2337 = vmatprep.subr.bf16.mxu0 %v1895
    %2338 = vmatpush1.bf16.msra.mxu0 %v1894
    %2339 = vmatprep.subr.bf16.mxu0 %v1899
    %2340 = vmatpush1.bf16.msra.mxu0 %v1898
    %2341 = vmatprep.subr.bf16.mxu0 %v1903
    %2342 = vmatpush1.bf16.msra.mxu0 %v1902
    %2343 = vmatprep.subr.bf16.mxu0 %v1907
    %2344 = vmatpush1.bf16.msra.mxu0 %v1906
    %2345 = vmatprep.subr.bf16.mxu0 %v1911
    %2346 = vmatpush1.bf16.msra.mxu0 %v1910
    %2347 = vmatprep.subr.bf16.mxu0 %v1915
    %2348 = vmatpush1.bf16.msra.mxu0 %v1914
    %2349 = vmatprep.subr.bf16.mxu0 %v1919
    %2350 = vmatpush1.bf16.msra.mxu0 %v1918
    %2351 = vmatprep.subr.bf16.mxu0 %v1923
    %2352 = vmatpush1.bf16.msra.mxu0 %v1922
    %2353 = vmatprep.subr.bf16.mxu0 %v1927
    %2354 = vmatpush1.bf16.msra.mxu0 %v1926
    %2355 = vmatprep.subr.bf16.mxu0 %v1931
    %2356 = vmatpush1.bf16.msra.mxu0 %v1930
    %2357 = vmatprep.subr.bf16.mxu0 %v1935
    %2358 = vmatpush1.bf16.msra.mxu0 %v1934
    %2359 = vmatprep.subr.bf16.mxu0 %v1939
    %2360 = vmatpush1.bf16.msra.mxu0 %v1938
    %2361 = vmatprep.subr.bf16.mxu0 %v1943
    %2362 = vmatpush1.bf16.msra.mxu0 %v1942
    %2363 = vmatprep.subr.bf16.mxu0 %v1947
    %2364 = vmatpush1.bf16.msra.mxu0 %v1946
    %2365 = vmatprep.subr.bf16.mxu0 %v1951
    %2366 = vmatpush1.bf16.msra.mxu0 %v1950
    %2367 = vmatprep.subr.bf16.mxu0 %v1955
    %2368 = vmatpush1.bf16.msra.mxu0 %v1954
    %2369 = vmatprep.mubr.bf16.mxu0 %v677
    %2370 = vmatmul.mubr.bf16.gmra.mrb[0].mxu0 %v676
    %v2371 = vpop.f32.mrb[0].mxu0
    %v2372 = vadd.f32 %v2331, %v2371
    %v2373 = vpop.f32.mrb[0].mxu0
    %v2374 = vadd.f32 %v2333, %v2373
    %v2375 = vpop.f32.mrb[0].mxu0
    %v2376 = vpop.f32.mrb[0].mxu0
    %2377 = vdwg.mxu0
    %2378 = vmatprep.subr.bf16.mxu0 %v1705
    %2379 = vmatpush1.bf16.msra.mxu0 %v1704
    %2380 = vmatprep.subr.bf16.mxu0 %v1709
    %2381 = vmatpush1.bf16.msra.mxu0 %v1708
    %2382 = vmatprep.subr.bf16.mxu0 %v1713
    %2383 = vmatpush1.bf16.msra.mxu0 %v1712
    %2384 = vmatprep.subr.bf16.mxu0 %v1717
    %2385 = vmatpush1.bf16.msra.mxu0 %v1716
    %2386 = vmatprep.subr.bf16.mxu0 %v1721
    %2387 = vmatpush1.bf16.msra.mxu0 %v1720
    %2388 = vmatprep.subr.bf16.mxu0 %v1725
    %2389 = vmatpush1.bf16.msra.mxu0 %v1724
    %2390 = vmatprep.subr.bf16.mxu0 %v1729
    %2391 = vmatpush1.bf16.msra.mxu0 %v1728
    %2392 = vmatprep.subr.bf16.mxu0 %v1733
    %2393 = vmatpush1.bf16.msra.mxu0 %v1732
    %2394 = vmatprep.subr.bf16.mxu0 %v1737
    %2395 = vmatpush1.bf16.msra.mxu0 %v1736
    %2396 = vmatprep.subr.bf16.mxu0 %v1741
    %2397 = vmatpush1.bf16.msra.mxu0 %v1740
    %2398 = vmatprep.subr.bf16.mxu0 %v1745
    %2399 = vmatpush1.bf16.msra.mxu0 %v1744
    %2400 = vmatprep.subr.bf16.mxu0 %v1749
    %2401 = vmatpush1.bf16.msra.mxu0 %v1748
    %2402 = vmatprep.subr.bf16.mxu0 %v1753
    %2403 = vmatpush1.bf16.msra.mxu0 %v1752
    %2404 = vmatprep.subr.bf16.mxu0 %v1757
    %2405 = vmatpush1.bf16.msra.mxu0 %v1756
    %2406 = vmatprep.subr.bf16.mxu0 %v1761
    %2407 = vmatpush1.bf16.msra.mxu0 %v1760
    %2408 = vmatprep.subr.bf16.mxu0 %v1765
    %2409 = vmatpush1.bf16.msra.mxu0 %v1764
    %2410 = vmatprep.mubr.bf16.mxu0 %v671
    %2411 = vmatmul.mubr.bf16.gmra.mrb[0].mxu0 %v670
    %v2412 = vpop.f32.mrb[0].mxu0
    %v2413 = vadd.f32 0.0, %v2412
    %v2414 = vpop.f32.mrb[0].mxu0
    %v2415 = vadd.f32 0.0, %v2414
    %v2416 = vpop.f32.mrb[0].mxu0
    %v2417 = vpop.f32.mrb[0].mxu0
    %2418 = vdwg.mxu0
    %2419 = vmatprep.subr.bf16.mxu0 %v1769
    %2420 = vmatpush1.bf16.msra.mxu0 %v1768
    %2421 = vmatprep.subr.bf16.mxu0 %v1773
    %2422 = vmatpush1.bf16.msra.mxu0 %v1772
    %2423 = vmatprep.subr.bf16.mxu0 %v1777
    %2424 = vmatpush1.bf16.msra.mxu0 %v1776
    %2425 = vmatprep.subr.bf16.mxu0 %v1781
    %2426 = vmatpush1.bf16.msra.mxu0 %v1780
    %2427 = vmatprep.subr.bf16.mxu0 %v1785
    %2428 = vmatpush1.bf16.msra.mxu0 %v1784
    %2429 = vmatprep.subr.bf16.mxu0 %v1789
    %2430 = vmatpush1.bf16.msra.mxu0 %v1788
    %2431 = vmatprep.subr.bf16.mxu0 %v1793
    %2432 = vmatpush1.bf16.msra.mxu0 %v1792
    %2433 = vmatprep.subr.bf16.mxu0 %v1797
    %2434 = vmatpush1.bf16.msra.mxu0 %v1796
    %2435 = vmatprep.subr.bf16.mxu0 %v1801
    %2436 = vmatpush1.bf16.msra.mxu0 %v1800
    %2437 = vmatprep.subr.bf16.mxu0 %v1805
    %2438 = vmatpush1.bf16.msra.mxu0 %v1804
    %2439 = vmatprep.subr.bf16.mxu0 %v1809
    %2440 = vmatpush1.bf16.msra.mxu0 %v1808
    %2441 = vmatprep.subr.bf16.mxu0 %v1813
    %2442 = vmatpush1.bf16.msra.mxu0 %v1812
    %2443 = vmatprep.subr.bf16.mxu0 %v1817
    %2444 = vmatpush1.bf16.msra.mxu0 %v1816
    %2445 = vmatprep.subr.bf16.mxu0 %v1821
    %2446 = vmatpush1.bf16.msra.mxu0 %v1820
    %2447 = vmatprep.subr.bf16.mxu0 %v1825
    %2448 = vmatpush1.bf16.msra.mxu0 %v1824
    %2449 = vmatprep.subr.bf16.mxu0 %v1829
    %2450 = vmatpush1.bf16.msra.mxu0 %v1828
    %2451 = vmatprep.mubr.bf16.mxu0 %v673
    %2452 = vmatmul.mubr.bf16.gmra.mrb[0].mxu0 %v672
    %v2453 = vpop.f32.mrb[0].mxu0
    %v2454 = vadd.f32 %v2413, %v2453
    %v2455 = vpop.f32.mrb[0].mxu0
    %v2456 = vadd.f32 %v2415, %v2455
    %v2457 = vpop.f32.mrb[0].mxu0
    %v2458 = vpop.f32.mrb[0].mxu0
    %2459 = vdwg.mxu0
    %2460 = vmatprep.subr.bf16.mxu0 %v1833
    %2461 = vmatpush1.bf16.msra.mxu0 %v1832
    %2462 = vmatprep.subr.bf16.mxu0 %v1837
    %2463 = vmatpush1.bf16.msra.mxu0 %v1836
    %2464 = vmatprep.subr.bf16.mxu0 %v1841
    %2465 = vmatpush1.bf16.msra.mxu0 %v1840
    %2466 = vmatprep.subr.bf16.mxu0 %v1845
    %2467 = vmatpush1.bf16.msra.mxu0 %v1844
    %2468 = vmatprep.subr.bf16.mxu0 %v1849
    %2469 = vmatpush1.bf16.msra.mxu0 %v1848
    %2470 = vmatprep.subr.bf16.mxu0 %v1853
    %2471 = vmatpush1.bf16.msra.mxu0 %v1852
    %2472 = vmatprep.subr.bf16.mxu0 %v1857
    %2473 = vmatpush1.bf16.msra.mxu0 %v1856
    %2474 = vmatprep.subr.bf16.mxu0 %v1861
    %2475 = vmatpush1.bf16.msra.mxu0 %v1860
    %2476 = vmatprep.subr.bf16.mxu0 %v1865
    %2477 = vmatpush1.bf16.msra.mxu0 %v1864
    %2478 = vmatprep.subr.bf16.mxu0 %v1869
    %2479 = vmatpush1.bf16.msra.mxu0 %v1868
    %2480 = vmatprep.subr.bf16.mxu0 %v1873
    %2481 = vmatpush1.bf16.msra.mxu0 %v1872
    %2482 = vmatprep.subr.bf16.mxu0 %v1877
    %2483 = vmatpush1.bf16.msra.mxu0 %v1876
    %2484 = vmatprep.subr.bf16.mxu0 %v1881
    %2485 = vmatpush1.bf16.msra.mxu0 %v1880
    %2486 = vmatprep.subr.bf16.mxu0 %v1885
    %2487 = vmatpush1.bf16.msra.mxu0 %v1884
    %2488 = vmatprep.subr.bf16.mxu0 %v1889
    %2489 = vmatpush1.bf16.msra.mxu0 %v1888
    %2490 = vmatprep.subr.bf16.mxu0 %v1893
    %2491 = vmatpush1.bf16.msra.mxu0 %v1892
    %2492 = vmatprep.mubr.bf16.mxu0 %v675
    %2493 = vmatmul.mubr.bf16.gmra.mrb[0].mxu0 %v674
    %v2494 = vpop.f32.mrb[0].mxu0
    %v2495 = vadd.f32 %v2454, %v2494
    %v2496 = vpop.f32.mrb[0].mxu0
    %v2497 = vadd.f32 %v2456, %v2496
    %v2498 = vpop.f32.mrb[0].mxu0
    %v2499 = vpop.f32.mrb[0].mxu0
    %2500 = vdwg.mxu0
    %2501 = vmatprep.subr.bf16.mxu0 %v1897
    %2502 = vmatpush1.bf16.msra.mxu0 %v1896
    %2503 = vmatprep.subr.bf16.mxu0 %v1901
    %2504 = vmatpush1.bf16.msra.mxu0 %v1900
    %2505 = vmatprep.subr.bf16.mxu0 %v1905
    %2506 = vmatpush1.bf16.msra.mxu0 %v1904
    %2507 = vmatprep.subr.bf16.mxu0 %v1909
    %2508 = vmatpush1.bf16.msra.mxu0 %v1908
    %2509 = vmatprep.subr.bf16.mxu0 %v1913
    %2510 = vmatpush1.bf16.msra.mxu0 %v1912
    %2511 = vmatprep.subr.bf16.mxu0 %v1917
    %2512 = vmatpush1.bf16.msra.mxu0 %v1916
    %2513 = vmatprep.subr.bf16.mxu0 %v1921
    %2514 = vmatpush1.bf16.msra.mxu0 %v1920
    %2515 = vmatprep.subr.bf16.mxu0 %v1925
    %2516 = vmatpush1.bf16.msra.mxu0 %v1924
    %2517 = vmatprep.subr.bf16.mxu0 %v1929
    %2518 = vmatpush1.bf16.msra.mxu0 %v1928
    %2519 = vmatprep.subr.bf16.mxu0 %v1933
    %2520 = vmatpush1.bf16.msra.mxu0 %v1932
    %2521 = vmatprep.subr.bf16.mxu0 %v1937
    %2522 = vmatpush1.bf16.msra.mxu0 %v1936
    %2523 = vmatprep.subr.bf16.mxu0 %v1941
    %2524 = vmatpush1.bf16.msra.mxu0 %v1940
    %2525 = vmatprep.subr.bf16.mxu0 %v1945
    %2526 = vmatpush1.bf16.msra.mxu0 %v1944
    %2527 = vmatprep.subr.bf16.mxu0 %v1949
    %2528 = vmatpush1.bf16.msra.mxu0 %v1948
    %2529 = vmatprep.subr.bf16.mxu0 %v1953
    %2530 = vmatpush1.bf16.msra.mxu0 %v1952
    %2531 = vmatprep.subr.bf16.mxu0 %v1957
    %2532 = vmatpush1.bf16.msra.mxu0 %v1956
    %2533 = vmatprep.mubr.bf16.mxu0 %v677
    %2534 = vmatmul.mubr.bf16.gmra.mrb[0].mxu0 %v676
    %v2535 = vpop.f32.mrb[0].mxu0
    %v2536 = vadd.f32 %v2495, %v2535
    %v2537 = vpop.f32.mrb[0].mxu0
    %v2538 = vadd.f32 %v2497, %v2537
    %v2539 = vpop.f32.mrb[0].mxu0
    %v2540 = vpop.f32.mrb[0].mxu0
    %2541 = vdwg.mxu0
    %v2542 = vpack.c.bf16 %v2372, %v2372
    %v2543 = vpack.c.bf16 %v2374, %v2374
    %v2544 = vpack.c.bf16 %v2536, %v2536
    %v2545 = vpack.c.bf16 %v2538, %v2538
    %v2546 = vld [vmem:[%s3] sm:$0xf]
    %v2549 = vunpack.c.l.s4 1966171168
    %v2550 = vunpack.c.0.s8 %v2549
    %v2551 = vlaneseq
    %v2552 = vshrl.u32 %v2551, 7
    %v2553 = vsub.s32 %v2550, %v2552
    %v2554 = vrot.slane %v2546, %v2553
    %v2555 = vcombine.high %v2554, %v2554
    %v2557 = vunpack.c.l.s4 1966171168
    %v2558 = vunpack.c.0.s8 %v2557
    %v2559 = vlaneseq
    %v2560 = vshrl.u32 %v2559, 7
    %v2561 = vsub.s32 %v2558, %v2560
    %v2562 = vrot.slane %v2554, %v2561
    %v2564 = vunpack.c.l.s4 1966171168
    %v2565 = vunpack.c.0.s8 %v2564
    %v2566 = vlaneseq
    %v2567 = vshrl.u32 %v2566, 7
    %v2568 = vsub.s32 %v2565, %v2567
    %v2569 = vrot.slane %v2555, %v2568
    %v2570 = vcombine.high %v2562, %v2562
    %v2571 = vcombine.high %v2569, %v2569
    %v2573 = vpack.i.b16 %v2562, %v2562
    %v2575 = vlaneseq
    %v2576 = vshrl.u32 %v2575, 7
    %v2577 = vsub.s32 0, %v2576
    %v2578 = vrot.slane %v2573, %v2577
    %v2580 = vpack.i.b16 %v2569, %v2569
    %v2582 = vlaneseq
    %v2583 = vshrl.u32 %v2582, 7
    %v2584 = vsub.s32 0, %v2583
    %v2585 = vrot.slane %v2580, %v2584
    %v2587 = vpack.i.b16 %v2570, %v2570
    %v2589 = vlaneseq
    %v2590 = vshrl.u32 %v2589, 7
    %v2591 = vsub.s32 0, %v2590
    %v2592 = vrot.slane %v2587, %v2591
    %v2594 = vpack.i.b16 %v2571, %v2571
    %v2596 = vlaneseq
    %v2597 = vshrl.u32 %v2596, 7
    %v2598 = vsub.s32 0, %v2597
    %v2599 = vrot.slane %v2594, %v2598
    %v2600 = vadd.bf16 %v2542, %v2578
    %v2601 = vadd.bf16 %v2543, %v2585
    %v2602 = vadd.bf16 %v2544, %v2592
    %v2603 = vadd.bf16 %v2545, %v2599
    %v2604 = vmul.bf16 %v2600, 1009007652
    %v2605 = vmul.bf16 %v2601, 1009007652
    %v2606 = vmul.bf16 %v2602, 1009007652
    %v2607 = vmul.bf16 %v2603, 1009007652
    %v2608 = vmax.bf16 %v2600, %v2604
    %v2609 = vmax.bf16 %v2601, %v2605
    %v2610 = vmax.bf16 %v2602, %v2606
    %v2611 = vmax.bf16 %v2603, %v2607
    %v2612 = vld [vmem:[#allocation8] sm:$0xf]
    %v2613 = vld [vmem:[#allocation8 + $0x4] sm:$0xf]
    %v2614 = vld [vmem:[#allocation8 + $0x8] sm:$0xf]
    %v2615 = vld [vmem:[#allocation8 + $0xc] sm:$0xf]
    %v2616 = vld [vmem:[#allocation8 + $0x10] sm:$0xf]
    %v2617 = vld [vmem:[#allocation8 + $0x14] sm:$0xf]
    %v2618 = vld [vmem:[#allocation8 + $0x18] sm:$0xf]
    %v2619 = vld [vmem:[#allocation8 + $0x1c] sm:$0xf]
    %v2620 = vld [vmem:[#allocation8 + $0x20] sm:$0xf]
    %v2621 = vld [vmem:[#allocation8 + $0x24] sm:$0xf]
    %v2622 = vld [vmem:[#allocation8 + $0x28] sm:$0xf]
    %v2623 = vld [vmem:[#allocation8 + $0x2c] sm:$0xf]
    %v2624 = vld [vmem:[#allocation8 + $0x30] sm:$0xf]
    %v2625 = vld [vmem:[#allocation8 + $0x34] sm:$0xf]
    %v2626 = vld [vmem:[#allocation8 + $0x38] sm:$0xf]
    %v2627 = vld [vmem:[#allocation8 + $0x3c] sm:$0xf]
    %v2628 = vld [vmem:[#allocation8 + $0x40] sm:$0xf]
    %v2629 = vld [vmem:[#allocation8 + $0x44] sm:$0xf]
    %v2630 = vld [vmem:[#allocation8 + $0x48] sm:$0xf]
    %v2631 = vld [vmem:[#allocation8 + $0x4c] sm:$0xf]
    %v2632 = vld [vmem:[#allocation8 + $0x50] sm:$0xf]
    %v2633 = vld [vmem:[#allocation8 + $0x54] sm:$0xf]
    %v2634 = vld [vmem:[#allocation8 + $0x58] sm:$0xf]
    %v2635 = vld [vmem:[#allocation8 + $0x5c] sm:$0xf]
    %v2636 = vld [vmem:[#allocation8 + $0x60] sm:$0xf]
    %v2637 = vld [vmem:[#allocation8 + $0x64] sm:$0xf]
    %v2638 = vld [vmem:[#allocation8 + $0x68] sm:$0xf]
    %v2639 = vld [vmem:[#allocation8 + $0x6c] sm:$0xf]
    %v2640 = vld [vmem:[#allocation8 + $0x70] sm:$0xf]
    %v2641 = vld [vmem:[#allocation8 + $0x74] sm:$0xf]
    %v2642 = vld [vmem:[#allocation8 + $0x78] sm:$0xf]
    %v2643 = vld [vmem:[#allocation8 + $0x7c] sm:$0xf]
    %v2644 = vld [vmem:[#allocation8 + $0x80] sm:$0xf]
    %v2645 = vld [vmem:[#allocation8 + $0x84] sm:$0xf]
    %v2646 = vld [vmem:[#allocation8 + $0x88] sm:$0xf]
    %v2647 = vld [vmem:[#allocation8 + $0x8c] sm:$0xf]
    %v2648 = vld [vmem:[#allocation8 + $0x90] sm:$0xf]
    %v2649 = vld [vmem:[#allocation8 + $0x94] sm:$0xf]
    %v2650 = vld [vmem:[#allocation8 + $0x98] sm:$0xf]
    %v2651 = vld [vmem:[#allocation8 + $0x9c] sm:$0xf]
    %v2652 = vld [vmem:[#allocation8 + $0xa0] sm:$0xf]
    %v2653 = vld [vmem:[#allocation8 + $0xa4] sm:$0xf]
    %v2654 = vld [vmem:[#allocation8 + $0xa8] sm:$0xf]
    %v2655 = vld [vmem:[#allocation8 + $0xac] sm:$0xf]
    %v2656 = vld [vmem:[#allocation8 + $0xb0] sm:$0xf]
    %v2657 = vld [vmem:[#allocation8 + $0xb4] sm:$0xf]
    %v2658 = vld [vmem:[#allocation8 + $0xb8] sm:$0xf]
    %v2659 = vld [vmem:[#allocation8 + $0xbc] sm:$0xf]
    %v2660 = vld [vmem:[#allocation8 + $0xc0] sm:$0xf]
    %v2661 = vld [vmem:[#allocation8 + $0xc4] sm:$0xf]
    %v2662 = vld [vmem:[#allocation8 + $0xc8] sm:$0xf]
    %v2663 = vld [vmem:[#allocation8 + $0xcc] sm:$0xf]
    %v2664 = vld [vmem:[#allocation8 + $0xd0] sm:$0xf]
    %v2665 = vld [vmem:[#allocation8 + $0xd4] sm:$0xf]
    %v2666 = vld [vmem:[#allocation8 + $0xd8] sm:$0xf]
    %v2667 = vld [vmem:[#allocation8 + $0xdc] sm:$0xf]
    %v2668 = vld [vmem:[#allocation8 + $0xe0] sm:$0xf]
    %v2669 = vld [vmem:[#allocation8 + $0xe4] sm:$0xf]
    %v2670 = vld [vmem:[#allocation8 + $0xe8] sm:$0xf]
    %v2671 = vld [vmem:[#allocation8 + $0xec] sm:$0xf]
    %v2672 = vld [vmem:[#allocation8 + $0xf0] sm:$0xf]
    %v2673 = vld [vmem:[#allocation8 + $0xf4] sm:$0xf]
    %v2674 = vld [vmem:[#allocation8 + $0xf8] sm:$0xf]
    %v2675 = vld [vmem:[#allocation8 + $0xfc] sm:$0xf]
    %v2740 = vunpack.c.l.b16 %v2612
    %v2741 = vunpack.c.l.b16 %v2613
    %v2742 = vunpack.c.l.b16 %v2614
    %v2743 = vunpack.c.l.b16 %v2615
    %v2744 = vunpack.c.l.b16 %v2616
    %v2745 = vunpack.c.l.b16 %v2617
    %v2746 = vunpack.c.l.b16 %v2618
    %v2747 = vunpack.c.l.b16 %v2619
    %v2748 = vunpack.c.l.b16 %v2620
    %v2749 = vunpack.c.l.b16 %v2621
    %v2750 = vunpack.c.l.b16 %v2622
    %v2751 = vunpack.c.l.b16 %v2623
    %v2752 = vunpack.c.l.b16 %v2624
    %v2753 = vunpack.c.l.b16 %v2625
    %v2754 = vunpack.c.l.b16 %v2626
    %v2755 = vunpack.c.l.b16 %v2627
    %v2756 = vunpack.c.l.b16 %v2628
    %v2757 = vunpack.c.l.b16 %v2629
    %v2758 = vunpack.c.l.b16 %v2630
    %v2759 = vunpack.c.l.b16 %v2631
    %v2760 = vunpack.c.l.b16 %v2632
    %v2761 = vunpack.c.l.b16 %v2633
    %v2762 = vunpack.c.l.b16 %v2634
    %v2763 = vunpack.c.l.b16 %v2635
    %v2764 = vunpack.c.l.b16 %v2636
    %v2765 = vunpack.c.l.b16 %v2637
    %v2766 = vunpack.c.l.b16 %v2638
    %v2767 = vunpack.c.l.b16 %v2639
    %v2768 = vunpack.c.l.b16 %v2640
    %v2769 = vunpack.c.l.b16 %v2641
    %v2770 = vunpack.c.l.b16 %v2642
    %v2771 = vunpack.c.l.b16 %v2643
    %v2772 = vunpack.c.l.b16 %v2644
    %v2773 = vunpack.c.l.b16 %v2645
    %v2774 = vunpack.c.l.b16 %v2646
    %v2775 = vunpack.c.l.b16 %v2647
    %v2776 = vunpack.c.l.b16 %v2648
    %v2777 = vunpack.c.l.b16 %v2649
    %v2778 = vunpack.c.l.b16 %v2650
    %v2779 = vunpack.c.l.b16 %v2651
    %v2780 = vunpack.c.l.b16 %v2652
    %v2781 = vunpack.c.l.b16 %v2653
    %v2782 = vunpack.c.l.b16 %v2654
    %v2783 = vunpack.c.l.b16 %v2655
    %v2784 = vunpack.c.l.b16 %v2656
    %v2785 = vunpack.c.l.b16 %v2657
    %v2786 = vunpack.c.l.b16 %v2658
    %v2787 = vunpack.c.l.b16 %v2659
    %v2788 = vunpack.c.l.b16 %v2660
    %v2789 = vunpack.c.l.b16 %v2661
    %v2790 = vunpack.c.l.b16 %v2662
    %v2791 = vunpack.c.l.b16 %v2663
    %v2792 = vunpack.c.l.b16 %v2664
    %v2793 = vunpack.c.l.b16 %v2665
    %v2794 = vunpack.c.l.b16 %v2666
    %v2795 = vunpack.c.l.b16 %v2667
    %v2796 = vunpack.c.l.b16 %v2668
    %v2797 = vunpack.c.l.b16 %v2669
    %v2798 = vunpack.c.l.b16 %v2670
    %v2799 = vunpack.c.l.b16 %v2671
    %v2800 = vunpack.c.l.b16 %v2672
    %v2801 = vunpack.c.l.b16 %v2673
    %v2802 = vunpack.c.l.b16 %v2674
    %v2803 = vunpack.c.l.b16 %v2675
    %v2804 = vpack.c.b16 %v2741, %v2740
    %v2805 = vpack.c.b16 %v2743, %v2742
    %v2806 = vpack.c.b16 %v2745, %v2744
    %v2807 = vpack.c.b16 %v2747, %v2746
    %v2808 = vpack.c.b16 %v2749, %v2748
    %v2809 = vpack.c.b16 %v2751, %v2750
    %v2810 = vpack.c.b16 %v2753, %v2752
    %v2811 = vpack.c.b16 %v2755, %v2754
    %v2812 = vpack.c.b16 %v2757, %v2756
    %v2813 = vpack.c.b16 %v2759, %v2758
    %v2814 = vpack.c.b16 %v2761, %v2760
    %v2815 = vpack.c.b16 %v2763, %v2762
    %v2816 = vpack.c.b16 %v2765, %v2764
    %v2817 = vpack.c.b16 %v2767, %v2766
    %v2818 = vpack.c.b16 %v2769, %v2768
    %v2819 = vpack.c.b16 %v2771, %v2770
    %v2820 = vpack.c.b16 %v2773, %v2772
    %v2821 = vpack.c.b16 %v2775, %v2774
    %v2822 = vpack.c.b16 %v2777, %v2776
    %v2823 = vpack.c.b16 %v2779, %v2778
    %v2824 = vpack.c.b16 %v2781, %v2780
    %v2825 = vpack.c.b16 %v2783, %v2782
    %v2826 = vpack.c.b16 %v2785, %v2784
    %v2827 = vpack.c.b16 %v2787, %v2786
    %v2828 = vpack.c.b16 %v2789, %v2788
    %v2829 = vpack.c.b16 %v2791, %v2790
    %v2830 = vpack.c.b16 %v2793, %v2792
    %v2831 = vpack.c.b16 %v2795, %v2794
    %v2832 = vpack.c.b16 %v2797, %v2796
    %v2833 = vpack.c.b16 %v2799, %v2798
    %v2834 = vpack.c.b16 %v2801, %v2800
    %v2835 = vpack.c.b16 %v2803, %v2802
    %2868 = vmatprep.subr.bf16.mxu0 0
    %2869 = vmatpush1.bf16.msra.mxu0 %v2804
    %2870 = vmatprep.subr.bf16.mxu0 0
    %2871 = vmatpush1.bf16.msra.mxu0 %v2805
    %2872 = vmatprep.subr.bf16.mxu0 0
    %2873 = vmatpush1.bf16.msra.mxu0 %v2806
    %2874 = vmatprep.subr.bf16.mxu0 0
    %2875 = vmatpush1.bf16.msra.mxu0 %v2807
    %2876 = vmatprep.subr.bf16.mxu0 0
    %2877 = vmatpush1.bf16.msra.mxu0 %v2808
    %2878 = vmatprep.subr.bf16.mxu0 0
    %2879 = vmatpush1.bf16.msra.mxu0 %v2809
    %2880 = vmatprep.subr.bf16.mxu0 0
    %2881 = vmatpush1.bf16.msra.mxu0 %v2810
    %2882 = vmatprep.subr.bf16.mxu0 0
    %2883 = vmatpush1.bf16.msra.mxu0 %v2811
    %2884 = vmatprep.subr.bf16.mxu0 0
    %2885 = vmatpush1.bf16.msra.mxu0 %v2812
    %2886 = vmatprep.subr.bf16.mxu0 0
    %2887 = vmatpush1.bf16.msra.mxu0 %v2813
    %2888 = vmatprep.subr.bf16.mxu0 0
    %2889 = vmatpush1.bf16.msra.mxu0 %v2814
    %2890 = vmatprep.subr.bf16.mxu0 0
    %2891 = vmatpush1.bf16.msra.mxu0 %v2815
    %2892 = vmatprep.subr.bf16.mxu0 0
    %2893 = vmatpush1.bf16.msra.mxu0 %v2816
    %2894 = vmatprep.subr.bf16.mxu0 0
    %2895 = vmatpush1.bf16.msra.mxu0 %v2817
    %2896 = vmatprep.subr.bf16.mxu0 0
    %2897 = vmatpush1.bf16.msra.mxu0 %v2818
    %2898 = vmatprep.subr.bf16.mxu0 0
    %2899 = vmatpush1.bf16.msra.mxu0 %v2819
    %2900 = vmatprep.mubr.bf16.mxu0 %v2609
    %2901 = vmatmul.mubr.bf16.gmra.mrb[0].mxu0 %v2608
    %v2902 = vpop.f32.mrb[0].mxu0
    %v2903 = vadd.f32 0.0, %v2902
    %v2904 = vpop.f32.mrb[0].mxu0
    %v2905 = vpop.f32.mrb[0].mxu0
    %v2906 = vpop.f32.mrb[0].mxu0
    %2907 = vdwg.mxu0
    %2908 = vmatprep.subr.bf16.mxu0 0
    %2909 = vmatpush1.bf16.msra.mxu0 %v2820
    %2910 = vmatprep.subr.bf16.mxu0 0
    %2911 = vmatpush1.bf16.msra.mxu0 %v2821
    %2912 = vmatprep.subr.bf16.mxu0 0
    %2913 = vmatpush1.bf16.msra.mxu0 %v2822
    %2914 = vmatprep.subr.bf16.mxu0 0
    %2915 = vmatpush1.bf16.msra.mxu0 %v2823
    %2916 = vmatprep.subr.bf16.mxu0 0
    %2917 = vmatpush1.bf16.msra.mxu0 %v2824
    %2918 = vmatprep.subr.bf16.mxu0 0
    %2919 = vmatpush1.bf16.msra.mxu0 %v2825
    %2920 = vmatprep.subr.bf16.mxu0 0
    %2921 = vmatpush1.bf16.msra.mxu0 %v2826
    %2922 = vmatprep.subr.bf16.mxu0 0
    %2923 = vmatpush1.bf16.msra.mxu0 %v2827
    %2924 = vmatprep.subr.bf16.mxu0 0
    %2925 = vmatpush1.bf16.msra.mxu0 %v2828
    %2926 = vmatprep.subr.bf16.mxu0 0
    %2927 = vmatpush1.bf16.msra.mxu0 %v2829
    %2928 = vmatprep.subr.bf16.mxu0 0
    %2929 = vmatpush1.bf16.msra.mxu0 %v2830
    %2930 = vmatprep.subr.bf16.mxu0 0
    %2931 = vmatpush1.bf16.msra.mxu0 %v2831
    %2932 = vmatprep.subr.bf16.mxu0 0
    %2933 = vmatpush1.bf16.msra.mxu0 %v2832
    %2934 = vmatprep.subr.bf16.mxu0 0
    %2935 = vmatpush1.bf16.msra.mxu0 %v2833
    %2936 = vmatprep.subr.bf16.mxu0 0
    %2937 = vmatpush1.bf16.msra.mxu0 %v2834
    %2938 = vmatprep.subr.bf16.mxu0 0
    %2939 = vmatpush1.bf16.msra.mxu0 %v2835
    %2940 = vmatprep.mubr.bf16.mxu0 %v2611
    %2941 = vmatmul.mubr.bf16.gmra.mrb[0].mxu0 %v2610
    %v2942 = vpop.f32.mrb[0].mxu0
    %v2943 = vadd.f32 %v2903, %v2942
    %v2944 = vpop.f32.mrb[0].mxu0
    %v2945 = vpop.f32.mrb[0].mxu0
    %v2946 = vpop.f32.mrb[0].mxu0
    %2947 = vdwg.mxu0
    %v2948 = vpack.c.bf16 %v2943, %v2943
    %v2949 = vld [vmem:[%s5] sm:$0x1]
    %v2951 = vpack.i.b16 %v2949, %v2949
    %v2953 = vlaneseq
    %v2954 = vshrl.u32 %v2953, 7
    %v2955 = vsub.s32 0, %v2954
    %v2956 = vrot.slane %v2951, %v2955
    %v2957 = vadd.bf16 %v2948, %v2956
    %v2958 = vmul.bf16 %v2957, 1009007652
    %v2959 = vmax.bf16 %v2957, %v2958
    %v2960 = vld [vmem:[#allocation10] sm:$0xf]
    %v2961 = vld [vmem:[#allocation10 + $0x4] sm:$0xf]
    %v2962 = vld [vmem:[#allocation10 + $0x8] sm:$0xf]
    %v2963 = vld [vmem:[#allocation10 + $0xc] sm:$0xf]
    %v2964 = vld [vmem:[#allocation10 + $0x10] sm:$0xf]
    %v2965 = vld [vmem:[#allocation10 + $0x14] sm:$0xf]
    %v2966 = vld [vmem:[#allocation10 + $0x18] sm:$0xf]
    %v2967 = vld [vmem:[#allocation10 + $0x1c] sm:$0xf]
    %v2968 = vld [vmem:[#allocation10 + $0x20] sm:$0xf]
    %v2969 = vld [vmem:[#allocation10 + $0x24] sm:$0xf]
    %v2970 = vld [vmem:[#allocation10 + $0x28] sm:$0xf]
    %v2971 = vld [vmem:[#allocation10 + $0x2c] sm:$0xf]
    %v2972 = vld [vmem:[#allocation10 + $0x30] sm:$0xf]
    %v2973 = vld [vmem:[#allocation10 + $0x34] sm:$0xf]
    %v2974 = vld [vmem:[#allocation10 + $0x38] sm:$0xf]
    %v2975 = vld [vmem:[#allocation10 + $0x3c] sm:$0xf]
    %v2992 = vunpack.c.l.b16 %v2960
    %v2993 = vunpack.c.l.b16 %v2961
    %v2994 = vunpack.c.l.b16 %v2962
    %v2995 = vunpack.c.l.b16 %v2963
    %v2996 = vunpack.c.l.b16 %v2964
    %v2997 = vunpack.c.l.b16 %v2965
    %v2998 = vunpack.c.l.b16 %v2966
    %v2999 = vunpack.c.l.b16 %v2967
    %v3000 = vunpack.c.l.b16 %v2968
    %v3001 = vunpack.c.l.b16 %v2969
    %v3002 = vunpack.c.l.b16 %v2970
    %v3003 = vunpack.c.l.b16 %v2971
    %v3004 = vunpack.c.l.b16 %v2972
    %v3005 = vunpack.c.l.b16 %v2973
    %v3006 = vunpack.c.l.b16 %v2974
    %v3007 = vunpack.c.l.b16 %v2975
    %v3008 = vpack.c.b16 %v2993, %v2992
    %v3009 = vpack.c.b16 %v2995, %v2994
    %v3010 = vpack.c.b16 %v2997, %v2996
    %v3011 = vpack.c.b16 %v2999, %v2998
    %v3012 = vpack.c.b16 %v3001, %v3000
    %v3013 = vpack.c.b16 %v3003, %v3002
    %v3014 = vpack.c.b16 %v3005, %v3004
    %v3015 = vpack.c.b16 %v3007, %v3006
    %3024 = vmatprep.subr.bf16.mxu0 0
    %3025 = vmatpush1.bf16.msra.mxu0 %v3008
    %3026 = vmatprep.subr.bf16.mxu0 0
    %3027 = vmatpush1.bf16.msra.mxu0 %v3009
    %3028 = vmatprep.subr.bf16.mxu0 0
    %3029 = vmatpush1.bf16.msra.mxu0 %v3010
    %3030 = vmatprep.subr.bf16.mxu0 0
    %3031 = vmatpush1.bf16.msra.mxu0 %v3011
    %3032 = vmatprep.subr.bf16.mxu0 0
    %3033 = vmatpush1.bf16.msra.mxu0 %v3012
    %3034 = vmatprep.subr.bf16.mxu0 0
    %3035 = vmatpush1.bf16.msra.mxu0 %v3013
    %3036 = vmatprep.subr.bf16.mxu0 0
    %3037 = vmatpush1.bf16.msra.mxu0 %v3014
    %3038 = vmatprep.subr.bf16.mxu0 0
    %3039 = vmatpush1.bf16.msra.mxu0 %v3015
    %3040 = vmatprep.subr.bf16.mxu0 0
    %3041 = vmatpush1.bf16.msra.mxu0 0
    %3042 = vmatprep.subr.bf16.mxu0 0
    %3043 = vmatpush1.bf16.msra.mxu0 0
    %3044 = vmatprep.subr.bf16.mxu0 0
    %3045 = vmatpush1.bf16.msra.mxu0 0
    %3046 = vmatprep.subr.bf16.mxu0 0
    %3047 = vmatpush1.bf16.msra.mxu0 0
    %3048 = vmatprep.subr.bf16.mxu0 0
    %3049 = vmatpush1.bf16.msra.mxu0 0
    %3050 = vmatprep.subr.bf16.mxu0 0
    %3051 = vmatpush1.bf16.msra.mxu0 0
    %3052 = vmatprep.subr.bf16.mxu0 0
    %3053 = vmatpush1.bf16.msra.mxu0 0
    %3054 = vmatprep.subr.bf16.mxu0 0
    %3055 = vmatpush1.bf16.msra.mxu0 0
    %3056 = vmatprep.mubr.bf16.mxu0 0
    %3057 = vmatmul.mubr.bf16.gmra.mrb[0].mxu0 %v2959
    %v3058 = vpop.f32.mrb[0].mxu0
    %v3059 = vadd.f32 0.0, %v3058
    %v3060 = vpop.f32.mrb[0].mxu0
    %v3061 = vpop.f32.mrb[0].mxu0
    %v3062 = vpop.f32.mrb[0].mxu0
    %3063 = vdwg.mxu0
    %v3064 = vpack.c.bf16 %v3059, %v3059
    %v3065 = vld [vmem:[%s7] sm:$0x1]
    %v3067 = vpack.i.b16 %v3065, %v3065
    %v3069 = vlaneseq
    %v3070 = vshrl.u32 %v3069, 7
    %v3071 = vsub.s32 0, %v3070
    %v3072 = vrot.slane %v3067, %v3071
    %v3073 = vadd.bf16 %v3064, %v3072
    %v3074 = vmul.bf16 %v3073, 1009007652
    %v3075 = vmax.bf16 %v3073, %v3074
    %v3076 = vld [vmem:[%s8] sm:$0x1]
    %v3077 = vunpack.c.l.bf16 %v3076
    %v3078 = vunpack.c.l.bf16 %v3075
    %v3079 = vlaneseq
    %v3080 = vshrl.u32 %v3079, 7
    %v3081 = vsub.s32 0, %v3080
    %v3082 = vrot.slane %v3077, %v3081
    %v3083 = vmul.f32 %v3078, %v3082
    %3084 = vadd.xlane.f32.xlu0 %v3083
    %v3085 = vpop.xlane.xlu0 %3084
    %v3086 = vld [vmem:[#allocation2] sm:$0x1]
    %v3088 = vlaneseq
    %v3089 = vshrl.u32 %v3088, 7
    %v3090 = vsub.s32 0, %v3089
    %v3091 = vrot.slane %v3086, %v3090
    %v3093 = vadd.f32 %v3085, %v3091
    %v3094 = vmul.f32 %v3093, 0.01
    %v3095 = vmax.f32 %v3093, %v3094
    %v3096 = vxor.u32 %v3095, 2147483648
    %v3097 = vmul.f32 %v3096, 1.442695
    %v3098 = vpow.pop %v3097
    %v3099 = vadd.f32 %v3098, 1.0
    %v3100 = vrcp.pop %v3099
    %v3101 = vmul.f32 1.0, %v3100
    %vm3102 = vcmask 7168
    %3103 = vst.msk [vmem:[%s10] sm:$0xff] %vm3102, %v3101
    // Predicated region
    $region62: #{tpu_custom_call.1} parent=1 // pred_check
      _
    $region63: #{tpu_custom_call.1} parent=1 // pred_check_branch
      %3105 = sbr.rel (0) target = $region65
    $region64: #{tpu_custom_call.1} parent=1 // pred_region
      _
    $region65: #{tpu_custom_call.1} parent=1 // pred_fallthru
      _
    // Predicated region
    $region66: #{tpu_custom_call.1} parent=1 // pred_check
      _
    $region67: #{tpu_custom_call.1} parent=1 // pred_check_branch
      %3107 = sbr.rel (0) target = $region69
    $region68: #{tpu_custom_call.1} parent=1 // pred_region
      _
    $region69: #{tpu_custom_call.1} parent=1 // pred_fallthru
      _
    %3108 = vsyncpa [#allocation4], 1
    %3109 = vsyncpa [#allocation6], 1
    %3110 = vsyncpa [#allocation9], 1

</llo_original>
